<compile_context>
chip_gen: v6e
topology: v6e:2x2x1
jax: 0.10.0
libtpu: 0.0.40
codegen_flags: <defaults>
</compile_context>

<pallas_src>
import functools

import jax
import jax.numpy as jnp
from jax.experimental import pallas as pl
from jax.experimental.pallas import tpu as pltpu


def policy_kernel(idx_ref, txp_ref, gru_ref, fc_ref, out_ref, xp_ref, *, H, Hp, Hr):
    """idx_ref: (B,T) int32 in SMEM.  txp_ref: (V,1,3*Hp) fused embedding+input-proj table.
    gru_ref: (Hr+8, 3*Hp) pack [rows 0:H = Wh (gate-padded) | row Hr, lanes 0:Hp = b_hn].
    fc_ref:  (Hr+8, O)   pack [rows 0:H = Wfc             | row Hr = b_fc].
    xp_ref:  (T, B, 3*Hp) VMEM scratch for the time-major staged projected inputs."""
    B, T = idx_ref.shape
    O = out_ref.shape[1]

    # Static, tile-aligned views into the packed parameter buffers.
    wh = gru_ref[0:H, :]                   # (H, 3*Hp)   gate order r | z | n
    bhn = gru_ref[Hr:Hr + 1, 0:Hp]         # (1, Hp)     b_hn (must stay inside r*(...))
    wfc = fc_ref[0:H, :]                   # (H, O)
    bfc = fc_ref[Hr:Hr + 1, :]             # (1, O)
    bhn_b = jnp.broadcast_to(bhn, (B, Hp)) # hoisted: JAX does not CSE broadcasts in the loop

    # Embedding + input projection == row lookup into the precomputed table.
    # Stage time-major so each recurrence step reads one clean, tile-aligned (B, 3*Hp) slab.
    for t in range(T):
        for b in range(B):
            tok = idx_ref[b, t]                        # scalar read from SMEM
            xp_ref[t, b:b + 1, :] = txp_ref[tok]       # dynamic row gather, off the h-chain

    # Fully unrolled recurrence (T is static and tiny) -> scheduler sees across iterations.
    h = jnp.zeros((B, Hp), jnp.float32)    # lane-padded hidden state; pad lanes are dead
    for t in range(T):
        g_x = xp_ref[t]                                                     # (B, 3*Hp)
        g_h = jnp.dot(h[:, 0:H], wh, preferred_element_type=jnp.float32)    # (B, 3*Hp)
        # Gate splits are 128-lane-tile aligned -> free vreg selections, no XLU rotates.
        r = jax.nn.sigmoid(g_x[:, 0:Hp] + g_h[:, 0:Hp])
        z = jax.nn.sigmoid(g_x[:, Hp:2 * Hp] + g_h[:, Hp:2 * Hp])
        n = jnp.tanh(g_x[:, 2 * Hp:] + r * (g_h[:, 2 * Hp:] + bhn_b))
        h = (1.0 - z) * n + z * h

    # Final linear on the last hidden state + numerically stable log_softmax.
    logits = jnp.dot(h[:, 0:H], wfc, preferred_element_type=jnp.float32) + bfc  # (B, O)
    m = jnp.max(logits, axis=-1, keepdims=True)
    s = logits - m
    out_ref[...] = s - jnp.log(jnp.sum(jnp.exp(s), axis=-1, keepdims=True))


def prepare_params(params):
    """ONE-TIME (init-side) fusion / folding / padding / packing.  Not per-forward work."""
    E, H = params["wir"].shape
    V = params["embedding"].shape[0]
    O = params["wfc"].shape[1]
    Hp = ((H + 127) // 128) * 128          # pad each gate block to a full 128-lane tile
    Hr = ((H + 7) // 8) * 8                # sublane-aligned row where the bias rows live

    def lanepad(a):                        # zero-pad last dim H -> Hp
        return jnp.pad(a, [(0, 0)] * (a.ndim - 1) + [(0, Hp - a.shape[-1])])

    # Fused, gate-padded input-side projection with the embedding folded in:
    #   txp[v] = e_v @ [Wir|Wiz|Win] + [b_ir+b_hr | b_iz+b_hz | b_in]   (pad lanes = 0)
    wi = jnp.concatenate([lanepad(params["wir"]), lanepad(params["wiz"]),
                          lanepad(params["win"])], axis=1)                     # (E, 3*Hp)
    bi = jnp.concatenate([lanepad(params["bir"] + params["bhr"]),
                          lanepad(params["biz"] + params["bhz"]),
                          lanepad(params["bin"])], axis=1)                     # (1, 3*Hp)
    txp = (params["embedding"] @ wi + bi).reshape(V, 1, 3 * Hp)                # (V, 1, 3*Hp)

    # Hidden-side fused gate weights: gate columns padded, contraction rows stay at H.
    wh = jnp.concatenate([lanepad(params["whr"]), lanepad(params["whz"]),
                          lanepad(params["whn"])], axis=1)                     # (H, 3*Hp)
    gru_pack = jnp.zeros((Hr + 8, 3 * Hp), jnp.float32)
    gru_pack = gru_pack.at[:H, :].set(wh)
    gru_pack = gru_pack.at[Hr, :Hp].set(lanepad(params["bhn"])[0])

    fc_pack = jnp.zeros((Hr + 8, O), jnp.float32)
    fc_pack = fc_pack.at[:H, :].set(params["wfc"])
    fc_pack = fc_pack.at[Hr, :].set(params["bfc"][0])

    return {"txp": txp, "gru_pack": gru_pack, "fc_pack": fc_pack,
            "H": H, "Hp": Hp, "Hr": Hr, "O": O}


def policy_forward(x_idx, prep):
    """x_idx: (B, T) int32 token indices.  Returns (B, num_outputs) float32 log-probs."""
    B, T = x_idx.shape
    H, Hp, Hr, O = prep["H"], prep["Hp"], prep["Hr"], prep["O"]
    kernel = functools.partial(policy_kernel, H=H, Hp=Hp, Hr=Hr)
    return pl.pallas_call(
        kernel,
        out_shape=jax.ShapeDtypeStruct((B, O), jnp.float32),
        in_specs=[
            pl.BlockSpec(memory_space=pltpu.MemorySpace.SMEM),   # token ids (scalar reads)
            pl.BlockSpec(memory_space=pltpu.MemorySpace.VMEM),   # fused emb+proj table
            pl.BlockSpec(memory_space=pltpu.MemorySpace.VMEM),   # packed Wh + b_hn
            pl.BlockSpec(memory_space=pltpu.MemorySpace.VMEM),   # packed Wfc + b_fc
        ],
        out_specs=pl.BlockSpec(memory_space=pltpu.MemorySpace.VMEM),
        scratch_shapes=[pltpu.VMEM((T, B, 3 * Hp), jnp.float32)],
    )(x_idx, prep["txp"], prep["gru_pack"], prep["fc_pack"])


def init_params(key, num_inputs, num_outputs, hidden_size, embedding_size):
    """Deterministic init mimicking PyTorch's default init shapes/scales."""
    ks = jax.random.split(key, 16)
    k = 1.0 / jnp.sqrt(hidden_size)
    u = lambda kk, shape, s: jax.random.uniform(kk, shape, jnp.float32, -s, s)
    return {
        # nn.Embedding(num_inputs, embedding_size): N(0, 1)
        "embedding": jax.random.normal(ks[0], (num_inputs, embedding_size), jnp.float32),
        # nn.GRU(E, H): weight_ih_l0 (3H, E) / weight_hh_l0 (3H, H) split into r/z/n, transposed.
        "wir": u(ks[1], (embedding_size, hidden_size), k),
        "wiz": u(ks[2], (embedding_size, hidden_size), k),
        "win": u(ks[3], (embedding_size, hidden_size), k),
        "whr": u(ks[4], (hidden_size, hidden_size), k),
        "whz": u(ks[5], (hidden_size, hidden_size), k),
        "whn": u(ks[6], (hidden_size, hidden_size), k),
        "bir": u(ks[7], (1, hidden_size), k),
        "biz": u(ks[8], (1, hidden_size), k),
        "bin": u(ks[9], (1, hidden_size), k),
        "bhr": u(ks[10], (1, hidden_size), k),
        "bhz": u(ks[11], (1, hidden_size), k),
        "bhn": u(ks[12], (1, hidden_size), k),
        # nn.Linear(H, O): weight (O, H) transposed, bias (O,)
        "wfc": u(ks[13], (hidden_size, num_outputs), k),
        "bfc": u(ks[14], (1, num_outputs), k),
    }


def policy_forward_ref(x_idx, params):
    """Pure-JAX reference of the same forward pass (validates the fusion/folding end to end)."""
    emb = params["embedding"][x_idx]          # (B, T, E)
    B, T, _ = emb.shape
    H = params["whr"].shape[0]
    h = jnp.zeros((B, H), jnp.float32)
    for t in range(T):
        x_t = emb[:, t, :]
        r = jax.nn.sigmoid(x_t @ params["wir"] + params["bir"] + h @ params["whr"] + params["bhr"])
        z = jax.nn.sigmoid(x_t @ params["wiz"] + params["biz"] + h @ params["whz"] + params["bhz"])
        n = jnp.tanh(x_t @ params["win"] + params["bin"] + r * (h @ params["whn"] + params["bhn"]))
        h = (1.0 - z) * n + z * h
    logits = h @ params["wfc"] + params["bfc"]
    return jax.nn.log_softmax(logits, axis=-1)


if __name__ == "__main__":
    # Shapes implied by the module:
    #   num_inputs (vocab) = 20, num_outputs = 20, hidden_size = 32, embedding_size = 16
    #   states: (batch=2, seq=8) int32 token indices.
    num_inputs, num_outputs, hidden_size, embedding_size = 20, 20, 32, 16
    B, T = 2, 8

    key = jax.random.PRNGKey(0)
    pkey, xkey = jax.random.split(key)
    params = init_params(pkey, num_inputs, num_outputs, hidden_size, embedding_size)
    prep = prepare_params(params)                       # one-time, init-side fusion/packing
    x_idx = jax.random.randint(xkey, (B, T), 0, num_inputs, dtype=jnp.int32)

    out = jax.block_until_ready(policy_forward(x_idx, prep))
    ref = jax.block_until_ready(policy_forward_ref(x_idx, params))

    assert out.shape == (B, num_outputs)
    assert jnp.allclose(out, ref, atol=1e-4, rtol=1e-4), (out, ref)
    print("KERNEL_OK")
</pallas_src>

<mosaic_0001>
module attributes {stable_mosaic.version = 11 : i64} {
  func.func @policy_kernel(%arg0: memref<2x8xi32, #tpu.memory_space<smem>>, %arg1: memref<20x1x384xf32, #tpu.memory_space<vmem>>, %arg2: memref<40x384xf32, #tpu.memory_space<vmem>>, %arg3: memref<40x20xf32, #tpu.memory_space<vmem>>, %arg4: memref<2x20xf32, #tpu.memory_space<vmem>>, %arg5: memref<8x2x384xf32, #tpu.memory_space<vmem>>) attributes {dimension_semantics = [], scalar_prefetch = 0 : i64, scratch_operands = 1 : i64, tpu.core_type = #tpu.core_type<tc>} {
    %c0 = arith.constant 0 : index
    %c0_0 = arith.constant 0 : index
    %0 = vector.load %arg2[%c0, %c0_0] : memref<40x384xf32, #tpu.memory_space<vmem>>, vector<32x384xf32>
    %c32 = arith.constant 32 : index
    %c0_1 = arith.constant 0 : index
    %1 = vector.load %arg2[%c32, %c0_1] : memref<40x384xf32, #tpu.memory_space<vmem>>, vector<1x128xf32>
    %c0_2 = arith.constant 0 : index
    %c0_3 = arith.constant 0 : index
    %2 = vector.load %arg3[%c0_2, %c0_3] : memref<40x20xf32, #tpu.memory_space<vmem>>, vector<32x20xf32>
    %c32_4 = arith.constant 32 : index
    %c0_5 = arith.constant 0 : index
    %3 = vector.load %arg3[%c32_4, %c0_5] : memref<40x20xf32, #tpu.memory_space<vmem>>, vector<1x20xf32>
    %4 = vector.shape_cast %1 : vector<1x128xf32> to vector<1x128xf32>
    %5 = vector.broadcast %4 : vector<1x128xf32> to vector<2x128xf32>
    %c0_6 = arith.constant 0 : index
    %c0_7 = arith.constant 0 : index
    %6 = memref.load %arg0[%c0_6, %c0_7] : memref<2x8xi32, #tpu.memory_space<smem>>
    %7 = arith.index_cast %6 : i32 to index
    %c0_8 = arith.constant 0 : index
    %c0_9 = arith.constant 0 : index
    %8 = vector.load %arg1[%7, %c0_8, %c0_9] : memref<20x1x384xf32, #tpu.memory_space<vmem>>, vector<1x1x384xf32>
    %9 = vector.shape_cast %8 : vector<1x1x384xf32> to vector<1x384xf32>
    %c0_10 = arith.constant 0 : index
    %c0_11 = arith.constant 0 : index
    %c0_12 = arith.constant 0 : index
    %10 = vector.load %arg5[%c0_10, %c0_11, %c0_12] : memref<8x2x384xf32, #tpu.memory_space<vmem>>, vector<1x1x384xf32>
    %11 = vector.shape_cast %10 : vector<1x1x384xf32> to vector<1x384xf32>
    %12 = vector.shape_cast %9 : vector<1x384xf32> to vector<1x1x384xf32>
    tpu.vector_store %arg5[%c0_10, %c0_11, %c0_12], %12 {strides = array<i32>} : memref<8x2x384xf32, #tpu.memory_space<vmem>>, vector<1x1x384xf32>,
    %c1 = arith.constant 1 : index
    %c0_13 = arith.constant 0 : index
    %13 = memref.load %arg0[%c1, %c0_13] : memref<2x8xi32, #tpu.memory_space<smem>>
    %14 = arith.index_cast %13 : i32 to index
    %c0_14 = arith.constant 0 : index
    %c0_15 = arith.constant 0 : index
    %15 = vector.load %arg1[%14, %c0_14, %c0_15] : memref<20x1x384xf32, #tpu.memory_space<vmem>>, vector<1x1x384xf32>
    %16 = vector.shape_cast %15 : vector<1x1x384xf32> to vector<1x384xf32>
    %c0_16 = arith.constant 0 : index
    %c1_17 = arith.constant 1 : index
    %c0_18 = arith.constant 0 : index
    %17 = vector.load %arg5[%c0_16, %c1_17, %c0_18] : memref<8x2x384xf32, #tpu.memory_space<vmem>>, vector<1x1x384xf32>
    %18 = vector.shape_cast %17 : vector<1x1x384xf32> to vector<1x384xf32>
    %19 = vector.shape_cast %16 : vector<1x384xf32> to vector<1x1x384xf32>
    tpu.vector_store %arg5[%c0_16, %c1_17, %c0_18], %19 {strides = array<i32>} : memref<8x2x384xf32, #tpu.memory_space<vmem>>, vector<1x1x384xf32>,
    %c0_19 = arith.constant 0 : index
    %c1_20 = arith.constant 1 : index
    %20 = memref.load %arg0[%c0_19, %c1_20] : memref<2x8xi32, #tpu.memory_space<smem>>
    %21 = arith.index_cast %20 : i32 to index
    %c0_21 = arith.constant 0 : index
    %c0_22 = arith.constant 0 : index
    %22 = vector.load %arg1[%21, %c0_21, %c0_22] : memref<20x1x384xf32, #tpu.memory_space<vmem>>, vector<1x1x384xf32>
    %23 = vector.shape_cast %22 : vector<1x1x384xf32> to vector<1x384xf32>
    %c1_23 = arith.constant 1 : index
    %c0_24 = arith.constant 0 : index
    %c0_25 = arith.constant 0 : index
    %24 = vector.load %arg5[%c1_23, %c0_24, %c0_25] : memref<8x2x384xf32, #tpu.memory_space<vmem>>, vector<1x1x384xf32>
    %25 = vector.shape_cast %24 : vector<1x1x384xf32> to vector<1x384xf32>
    %26 = vector.shape_cast %23 : vector<1x384xf32> to vector<1x1x384xf32>
    tpu.vector_store %arg5[%c1_23, %c0_24, %c0_25], %26 {strides = array<i32>} : memref<8x2x384xf32, #tpu.memory_space<vmem>>, vector<1x1x384xf32>,
    %c1_26 = arith.constant 1 : index
    %c1_27 = arith.constant 1 : index
    %27 = memref.load %arg0[%c1_26, %c1_27] : memref<2x8xi32, #tpu.memory_space<smem>>
    %28 = arith.index_cast %27 : i32 to index
    %c0_28 = arith.constant 0 : index
    %c0_29 = arith.constant 0 : index
    %29 = vector.load %arg1[%28, %c0_28, %c0_29] : memref<20x1x384xf32, #tpu.memory_space<vmem>>, vector<1x1x384xf32>
    %30 = vector.shape_cast %29 : vector<1x1x384xf32> to vector<1x384xf32>
    %c1_30 = arith.constant 1 : index
    %c1_31 = arith.constant 1 : index
    %c0_32 = arith.constant 0 : index
    %31 = vector.load %arg5[%c1_30, %c1_31, %c0_32] : memref<8x2x384xf32, #tpu.memory_space<vmem>>, vector<1x1x384xf32>
    %32 = vector.shape_cast %31 : vector<1x1x384xf32> to vector<1x384xf32>
    %33 = vector.shape_cast %30 : vector<1x384xf32> to vector<1x1x384xf32>
    tpu.vector_store %arg5[%c1_30, %c1_31, %c0_32], %33 {strides = array<i32>} : memref<8x2x384xf32, #tpu.memory_space<vmem>>, vector<1x1x384xf32>,
    %c0_33 = arith.constant 0 : index
    %c2 = arith.constant 2 : index
    %34 = memref.load %arg0[%c0_33, %c2] : memref<2x8xi32, #tpu.memory_space<smem>>
    %35 = arith.index_cast %34 : i32 to index
    %c0_34 = arith.constant 0 : index
    %c0_35 = arith.constant 0 : index
    %36 = vector.load %arg1[%35, %c0_34, %c0_35] : memref<20x1x384xf32, #tpu.memory_space<vmem>>, vector<1x1x384xf32>
    %37 = vector.shape_cast %36 : vector<1x1x384xf32> to vector<1x384xf32>
    %c2_36 = arith.constant 2 : index
    %c0_37 = arith.constant 0 : index
    %c0_38 = arith.constant 0 : index
    %38 = vector.load %arg5[%c2_36, %c0_37, %c0_38] : memref<8x2x384xf32, #tpu.memory_space<vmem>>, vector<1x1x384xf32>
    %39 = vector.shape_cast %38 : vector<1x1x384xf32> to vector<1x384xf32>
    %40 = vector.shape_cast %37 : vector<1x384xf32> to vector<1x1x384xf32>
    tpu.vector_store %arg5[%c2_36, %c0_37, %c0_38], %40 {strides = array<i32>} : memref<8x2x384xf32, #tpu.memory_space<vmem>>, vector<1x1x384xf32>,
    %c1_39 = arith.constant 1 : index
    %c2_40 = arith.constant 2 : index
    %41 = memref.load %arg0[%c1_39, %c2_40] : memref<2x8xi32, #tpu.memory_space<smem>>
    %42 = arith.index_cast %41 : i32 to index
    %c0_41 = arith.constant 0 : index
    %c0_42 = arith.constant 0 : index
    %43 = vector.load %arg1[%42, %c0_41, %c0_42] : memref<20x1x384xf32, #tpu.memory_space<vmem>>, vector<1x1x384xf32>
    %44 = vector.shape_cast %43 : vector<1x1x384xf32> to vector<1x384xf32>
    %c2_43 = arith.constant 2 : index
    %c1_44 = arith.constant 1 : index
    %c0_45 = arith.constant 0 : index
    %45 = vector.load %arg5[%c2_43, %c1_44, %c0_45] : memref<8x2x384xf32, #tpu.memory_space<vmem>>, vector<1x1x384xf32>
    %46 = vector.shape_cast %45 : vector<1x1x384xf32> to vector<1x384xf32>
    %47 = vector.shape_cast %44 : vector<1x384xf32> to vector<1x1x384xf32>
    tpu.vector_store %arg5[%c2_43, %c1_44, %c0_45], %47 {strides = array<i32>} : memref<8x2x384xf32, #tpu.memory_space<vmem>>, vector<1x1x384xf32>,
    %c0_46 = arith.constant 0 : index
    %c3 = arith.constant 3 : index
    %48 = memref.load %arg0[%c0_46, %c3] : memref<2x8xi32, #tpu.memory_space<smem>>
    %49 = arith.index_cast %48 : i32 to index
    %c0_47 = arith.constant 0 : index
    %c0_48 = arith.constant 0 : index
    %50 = vector.load %arg1[%49, %c0_47, %c0_48] : memref<20x1x384xf32, #tpu.memory_space<vmem>>, vector<1x1x384xf32>
    %51 = vector.shape_cast %50 : vector<1x1x384xf32> to vector<1x384xf32>
    %c3_49 = arith.constant 3 : index
    %c0_50 = arith.constant 0 : index
    %c0_51 = arith.constant 0 : index
    %52 = vector.load %arg5[%c3_49, %c0_50, %c0_51] : memref<8x2x384xf32, #tpu.memory_space<vmem>>, vector<1x1x384xf32>
    %53 = vector.shape_cast %52 : vector<1x1x384xf32> to vector<1x384xf32>
    %54 = vector.shape_cast %51 : vector<1x384xf32> to vector<1x1x384xf32>
    tpu.vector_store %arg5[%c3_49, %c0_50, %c0_51], %54 {strides = array<i32>} : memref<8x2x384xf32, #tpu.memory_space<vmem>>, vector<1x1x384xf32>,
    %c1_52 = arith.constant 1 : index
    %c3_53 = arith.constant 3 : index
    %55 = memref.load %arg0[%c1_52, %c3_53] : memref<2x8xi32, #tpu.memory_space<smem>>
    %56 = arith.index_cast %55 : i32 to index
    %c0_54 = arith.constant 0 : index
    %c0_55 = arith.constant 0 : index
    %57 = vector.load %arg1[%56, %c0_54, %c0_55] : memref<20x1x384xf32, #tpu.memory_space<vmem>>, vector<1x1x384xf32>
    %58 = vector.shape_cast %57 : vector<1x1x384xf32> to vector<1x384xf32>
    %c3_56 = arith.constant 3 : index
    %c1_57 = arith.constant 1 : index
    %c0_58 = arith.constant 0 : index
    %59 = vector.load %arg5[%c3_56, %c1_57, %c0_58] : memref<8x2x384xf32, #tpu.memory_space<vmem>>, vector<1x1x384xf32>
    %60 = vector.shape_cast %59 : vector<1x1x384xf32> to vector<1x384xf32>
    %61 = vector.shape_cast %58 : vector<1x384xf32> to vector<1x1x384xf32>
    tpu.vector_store %arg5[%c3_56, %c1_57, %c0_58], %61 {strides = array<i32>} : memref<8x2x384xf32, #tpu.memory_space<vmem>>, vector<1x1x384xf32>,
    %c0_59 = arith.constant 0 : index
    %c4 = arith.constant 4 : index
    %62 = memref.load %arg0[%c0_59, %c4] : memref<2x8xi32, #tpu.memory_space<smem>>
    %63 = arith.index_cast %62 : i32 to index
    %c0_60 = arith.constant 0 : index
    %c0_61 = arith.constant 0 : index
    %64 = vector.load %arg1[%63, %c0_60, %c0_61] : memref<20x1x384xf32, #tpu.memory_space<vmem>>, vector<1x1x384xf32>
    %65 = vector.shape_cast %64 : vector<1x1x384xf32> to vector<1x384xf32>
    %c4_62 = arith.constant 4 : index
    %c0_63 = arith.constant 0 : index
    %c0_64 = arith.constant 0 : index
    %66 = vector.load %arg5[%c4_62, %c0_63, %c0_64] : memref<8x2x384xf32, #tpu.memory_space<vmem>>, vector<1x1x384xf32>
    %67 = vector.shape_cast %66 : vector<1x1x384xf32> to vector<1x384xf32>
    %68 = vector.shape_cast %65 : vector<1x384xf32> to vector<1x1x384xf32>
    tpu.vector_store %arg5[%c4_62, %c0_63, %c0_64], %68 {strides = array<i32>} : memref<8x2x384xf32, #tpu.memory_space<vmem>>, vector<1x1x384xf32>,
    %c1_65 = arith.constant 1 : index
    %c4_66 = arith.constant 4 : index
    %69 = memref.load %arg0[%c1_65, %c4_66] : memref<2x8xi32, #tpu.memory_space<smem>>
    %70 = arith.index_cast %69 : i32 to index
    %c0_67 = arith.constant 0 : index
    %c0_68 = arith.constant 0 : index
    %71 = vector.load %arg1[%70, %c0_67, %c0_68] : memref<20x1x384xf32, #tpu.memory_space<vmem>>, vector<1x1x384xf32>
    %72 = vector.shape_cast %71 : vector<1x1x384xf32> to vector<1x384xf32>
    %c4_69 = arith.constant 4 : index
    %c1_70 = arith.constant 1 : index
    %c0_71 = arith.constant 0 : index
    %73 = vector.load %arg5[%c4_69, %c1_70, %c0_71] : memref<8x2x384xf32, #tpu.memory_space<vmem>>, vector<1x1x384xf32>
    %74 = vector.shape_cast %73 : vector<1x1x384xf32> to vector<1x384xf32>
    %75 = vector.shape_cast %72 : vector<1x384xf32> to vector<1x1x384xf32>
    tpu.vector_store %arg5[%c4_69, %c1_70, %c0_71], %75 {strides = array<i32>} : memref<8x2x384xf32, #tpu.memory_space<vmem>>, vector<1x1x384xf32>,
    %c0_72 = arith.constant 0 : index
    %c5 = arith.constant 5 : index
    %76 = memref.load %arg0[%c0_72, %c5] : memref<2x8xi32, #tpu.memory_space<smem>>
    %77 = arith.index_cast %76 : i32 to index
    %c0_73 = arith.constant 0 : index
    %c0_74 = arith.constant 0 : index
    %78 = vector.load %arg1[%77, %c0_73, %c0_74] : memref<20x1x384xf32, #tpu.memory_space<vmem>>, vector<1x1x384xf32>
    %79 = vector.shape_cast %78 : vector<1x1x384xf32> to vector<1x384xf32>
    %c5_75 = arith.constant 5 : index
    %c0_76 = arith.constant 0 : index
    %c0_77 = arith.constant 0 : index
    %80 = vector.load %arg5[%c5_75, %c0_76, %c0_77] : memref<8x2x384xf32, #tpu.memory_space<vmem>>, vector<1x1x384xf32>
    %81 = vector.shape_cast %80 : vector<1x1x384xf32> to vector<1x384xf32>
    %82 = vector.shape_cast %79 : vector<1x384xf32> to vector<1x1x384xf32>
    tpu.vector_store %arg5[%c5_75, %c0_76, %c0_77], %82 {strides = array<i32>} : memref<8x2x384xf32, #tpu.memory_space<vmem>>, vector<1x1x384xf32>,
    %c1_78 = arith.constant 1 : index
    %c5_79 = arith.constant 5 : index
    %83 = memref.load %arg0[%c1_78, %c5_79] : memref<2x8xi32, #tpu.memory_space<smem>>
    %84 = arith.index_cast %83 : i32 to index
    %c0_80 = arith.constant 0 : index
    %c0_81 = arith.constant 0 : index
    %85 = vector.load %arg1[%84, %c0_80, %c0_81] : memref<20x1x384xf32, #tpu.memory_space<vmem>>, vector<1x1x384xf32>
    %86 = vector.shape_cast %85 : vector<1x1x384xf32> to vector<1x384xf32>
    %c5_82 = arith.constant 5 : index
    %c1_83 = arith.constant 1 : index
    %c0_84 = arith.constant 0 : index
    %87 = vector.load %arg5[%c5_82, %c1_83, %c0_84] : memref<8x2x384xf32, #tpu.memory_space<vmem>>, vector<1x1x384xf32>
    %88 = vector.shape_cast %87 : vector<1x1x384xf32> to vector<1x384xf32>
    %89 = vector.shape_cast %86 : vector<1x384xf32> to vector<1x1x384xf32>
    tpu.vector_store %arg5[%c5_82, %c1_83, %c0_84], %89 {strides = array<i32>} : memref<8x2x384xf32, #tpu.memory_space<vmem>>, vector<1x1x384xf32>,
    %c0_85 = arith.constant 0 : index
    %c6 = arith.constant 6 : index
    %90 = memref.load %arg0[%c0_85, %c6] : memref<2x8xi32, #tpu.memory_space<smem>>
    %91 = arith.index_cast %90 : i32 to index
    %c0_86 = arith.constant 0 : index
    %c0_87 = arith.constant 0 : index
    %92 = vector.load %arg1[%91, %c0_86, %c0_87] : memref<20x1x384xf32, #tpu.memory_space<vmem>>, vector<1x1x384xf32>
    %93 = vector.shape_cast %92 : vector<1x1x384xf32> to vector<1x384xf32>
    %c6_88 = arith.constant 6 : index
    %c0_89 = arith.constant 0 : index
    %c0_90 = arith.constant 0 : index
    %94 = vector.load %arg5[%c6_88, %c0_89, %c0_90] : memref<8x2x384xf32, #tpu.memory_space<vmem>>, vector<1x1x384xf32>
    %95 = vector.shape_cast %94 : vector<1x1x384xf32> to vector<1x384xf32>
    %96 = vector.shape_cast %93 : vector<1x384xf32> to vector<1x1x384xf32>
    tpu.vector_store %arg5[%c6_88, %c0_89, %c0_90], %96 {strides = array<i32>} : memref<8x2x384xf32, #tpu.memory_space<vmem>>, vector<1x1x384xf32>,
    %c1_91 = arith.constant 1 : index
    %c6_92 = arith.constant 6 : index
    %97 = memref.load %arg0[%c1_91, %c6_92] : memref<2x8xi32, #tpu.memory_space<smem>>
    %98 = arith.index_cast %97 : i32 to index
    %c0_93 = arith.constant 0 : index
    %c0_94 = arith.constant 0 : index
    %99 = vector.load %arg1[%98, %c0_93, %c0_94] : memref<20x1x384xf32, #tpu.memory_space<vmem>>, vector<1x1x384xf32>
    %100 = vector.shape_cast %99 : vector<1x1x384xf32> to vector<1x384xf32>
    %c6_95 = arith.constant 6 : index
    %c1_96 = arith.constant 1 : index
    %c0_97 = arith.constant 0 : index
    %101 = vector.load %arg5[%c6_95, %c1_96, %c0_97] : memref<8x2x384xf32, #tpu.memory_space<vmem>>, vector<1x1x384xf32>
    %102 = vector.shape_cast %101 : vector<1x1x384xf32> to vector<1x384xf32>
    %103 = vector.shape_cast %100 : vector<1x384xf32> to vector<1x1x384xf32>
    tpu.vector_store %arg5[%c6_95, %c1_96, %c0_97], %103 {strides = array<i32>} : memref<8x2x384xf32, #tpu.memory_space<vmem>>, vector<1x1x384xf32>,
    %c0_98 = arith.constant 0 : index
    %c7 = arith.constant 7 : index
    %104 = memref.load %arg0[%c0_98, %c7] : memref<2x8xi32, #tpu.memory_space<smem>>
    %105 = arith.index_cast %104 : i32 to index
    %c0_99 = arith.constant 0 : index
    %c0_100 = arith.constant 0 : index
    %106 = vector.load %arg1[%105, %c0_99, %c0_100] : memref<20x1x384xf32, #tpu.memory_space<vmem>>, vector<1x1x384xf32>
    %107 = vector.shape_cast %106 : vector<1x1x384xf32> to vector<1x384xf32>
    %c7_101 = arith.constant 7 : index
    %c0_102 = arith.constant 0 : index
    %c0_103 = arith.constant 0 : index
    %108 = vector.load %arg5[%c7_101, %c0_102, %c0_103] : memref<8x2x384xf32, #tpu.memory_space<vmem>>, vector<1x1x384xf32>
    %109 = vector.shape_cast %108 : vector<1x1x384xf32> to vector<1x384xf32>
    %110 = vector.shape_cast %107 : vector<1x384xf32> to vector<1x1x384xf32>
    tpu.vector_store %arg5[%c7_101, %c0_102, %c0_103], %110 {strides = array<i32>} : memref<8x2x384xf32, #tpu.memory_space<vmem>>, vector<1x1x384xf32>,
    %c1_104 = arith.constant 1 : index
    %c7_105 = arith.constant 7 : index
    %111 = memref.load %arg0[%c1_104, %c7_105] : memref<2x8xi32, #tpu.memory_space<smem>>
    %112 = arith.index_cast %111 : i32 to index
    %c0_106 = arith.constant 0 : index
    %c0_107 = arith.constant 0 : index
    %113 = vector.load %arg1[%112, %c0_106, %c0_107] : memref<20x1x384xf32, #tpu.memory_space<vmem>>, vector<1x1x384xf32>
    %114 = vector.shape_cast %113 : vector<1x1x384xf32> to vector<1x384xf32>
    %c7_108 = arith.constant 7 : index
    %c1_109 = arith.constant 1 : index
    %c0_110 = arith.constant 0 : index
    %115 = vector.load %arg5[%c7_108, %c1_109, %c0_110] : memref<8x2x384xf32, #tpu.memory_space<vmem>>, vector<1x1x384xf32>
    %116 = vector.shape_cast %115 : vector<1x1x384xf32> to vector<1x384xf32>
    %117 = vector.shape_cast %114 : vector<1x384xf32> to vector<1x1x384xf32>
    tpu.vector_store %arg5[%c7_108, %c1_109, %c0_110], %117 {strides = array<i32>} : memref<8x2x384xf32, #tpu.memory_space<vmem>>, vector<1x1x384xf32>,
    %cst = arith.constant 0.000000e+00 : f32
    %118 = vector.broadcast %cst : f32 to vector<2x128xf32>
    %c0_111 = arith.constant 0 : index
    %c0_112 = arith.constant 0 : index
    %c0_113 = arith.constant 0 : index
    %119 = vector.load %arg5[%c0_111, %c0_112, %c0_113] : memref<8x2x384xf32, #tpu.memory_space<vmem>>, vector<1x2x384xf32>
    %120 = vector.shape_cast %119 : vector<1x2x384xf32> to vector<2x384xf32>
    %121 = vector.extract_strided_slice %118 {offsets = [0, 0], sizes = [2, 32], strides = [1, 1]} : vector<2x128xf32> to vector<2x32xf32>
    %cst_114 = arith.constant dense<0.000000e+00> : vector<2x384xf32>
    %122 = tpu.matmul %121, %0, %cst_114 {dimension_numbers = #tpu.dot_dimension_numbers<[1], [0], [0], [1], [0, 0, 1, 1], [], []>} : vector<2x32xf32>, vector<32x384xf32>, vector<2x384xf32> -> vector<2x384xf32>
    %123 = vector.extract_strided_slice %120 {offsets = [0, 0], sizes = [2, 128], strides = [1, 1]} : vector<2x384xf32> to vector<2x128xf32>
    %124 = vector.extract_strided_slice %122 {offsets = [0, 0], sizes = [2, 128], strides = [1, 1]} : vector<2x384xf32> to vector<2x128xf32>
    %125 = arith.addf %123, %124 : vector<2x128xf32>
    %126 = arith.negf %125 : vector<2x128xf32>
    %127 = math.exp %126 : vector<2x128xf32>
    %cst_115 = arith.constant 1.000000e+00 : f32
    %128 = vector.broadcast %cst_115 : f32 to vector<2x128xf32>
    %129 = arith.addf %128, %127 : vector<2x128xf32>
    %130 = arith.divf %128, %129 : vector<2x128xf32>
    %131 = vector.extract_strided_slice %120 {offsets = [0, 128], sizes = [2, 128], strides = [1, 1]} : vector<2x384xf32> to vector<2x128xf32>
    %132 = vector.extract_strided_slice %122 {offsets = [0, 128], sizes = [2, 128], strides = [1, 1]} : vector<2x384xf32> to vector<2x128xf32>
    %133 = arith.addf %131, %132 : vector<2x128xf32>
    %134 = arith.negf %133 : vector<2x128xf32>
    %135 = math.exp %134 : vector<2x128xf32>
    %cst_116 = arith.constant 1.000000e+00 : f32
    %136 = vector.broadcast %cst_116 : f32 to vector<2x128xf32>
    %137 = arith.addf %136, %135 : vector<2x128xf32>
    %138 = arith.divf %136, %137 : vector<2x128xf32>
    %139 = vector.extract_strided_slice %120 {offsets = [0, 256], sizes = [2, 128], strides = [1, 1]} : vector<2x384xf32> to vector<2x128xf32>
    %140 = vector.extract_strided_slice %122 {offsets = [0, 256], sizes = [2, 128], strides = [1, 1]} : vector<2x384xf32> to vector<2x128xf32>
    %141 = arith.addf %140, %5 : vector<2x128xf32>
    %142 = arith.mulf %130, %141 : vector<2x128xf32>
    %143 = arith.addf %139, %142 : vector<2x128xf32>
    %144 = math.tanh %143 : vector<2x128xf32>
    %cst_117 = arith.constant 1.000000e+00 : f32
    %145 = vector.broadcast %cst_117 : f32 to vector<2x128xf32>
    %146 = arith.subf %145, %138 : vector<2x128xf32>
    %147 = arith.mulf %146, %144 : vector<2x128xf32>
    %148 = arith.mulf %138, %118 : vector<2x128xf32>
    %149 = arith.addf %147, %148 : vector<2x128xf32>
    %c1_118 = arith.constant 1 : index
    %c0_119 = arith.constant 0 : index
    %c0_120 = arith.constant 0 : index
    %150 = vector.load %arg5[%c1_118, %c0_119, %c0_120] : memref<8x2x384xf32, #tpu.memory_space<vmem>>, vector<1x2x384xf32>
    %151 = vector.shape_cast %150 : vector<1x2x384xf32> to vector<2x384xf32>
    %152 = vector.extract_strided_slice %149 {offsets = [0, 0], sizes = [2, 32], strides = [1, 1]} : vector<2x128xf32> to vector<2x32xf32>
    %cst_121 = arith.constant dense<0.000000e+00> : vector<2x384xf32>
    %153 = tpu.matmul %152, %0, %cst_121 {dimension_numbers = #tpu.dot_dimension_numbers<[1], [0], [0], [1], [0, 0, 1, 1], [], []>} : vector<2x32xf32>, vector<32x384xf32>, vector<2x384xf32> -> vector<2x384xf32>
    %154 = vector.extract_strided_slice %151 {offsets = [0, 0], sizes = [2, 128], strides = [1, 1]} : vector<2x384xf32> to vector<2x128xf32>
    %155 = vector.extract_strided_slice %153 {offsets = [0, 0], sizes = [2, 128], strides = [1, 1]} : vector<2x384xf32> to vector<2x128xf32>
    %156 = arith.addf %154, %155 : vector<2x128xf32>
    %157 = arith.negf %156 : vector<2x128xf32>
    %158 = math.exp %157 : vector<2x128xf32>
    %cst_122 = arith.constant 1.000000e+00 : f32
    %159 = vector.broadcast %cst_122 : f32 to vector<2x128xf32>
    %160 = arith.addf %159, %158 : vector<2x128xf32>
    %161 = arith.divf %159, %160 : vector<2x128xf32>
    %162 = vector.extract_strided_slice %151 {offsets = [0, 128], sizes = [2, 128], strides = [1, 1]} : vector<2x384xf32> to vector<2x128xf32>
    %163 = vector.extract_strided_slice %153 {offsets = [0, 128], sizes = [2, 128], strides = [1, 1]} : vector<2x384xf32> to vector<2x128xf32>
    %164 = arith.addf %162, %163 : vector<2x128xf32>
    %165 = arith.negf %164 : vector<2x128xf32>
    %166 = math.exp %165 : vector<2x128xf32>
    %cst_123 = arith.constant 1.000000e+00 : f32
    %167 = vector.broadcast %cst_123 : f32 to vector<2x128xf32>
    %168 = arith.addf %167, %166 : vector<2x128xf32>
    %169 = arith.divf %167, %168 : vector<2x128xf32>
    %170 = vector.extract_strided_slice %151 {offsets = [0, 256], sizes = [2, 128], strides = [1, 1]} : vector<2x384xf32> to vector<2x128xf32>
    %171 = vector.extract_strided_slice %153 {offsets = [0, 256], sizes = [2, 128], strides = [1, 1]} : vector<2x384xf32> to vector<2x128xf32>
    %172 = arith.addf %171, %5 : vector<2x128xf32>
    %173 = arith.mulf %161, %172 : vector<2x128xf32>
    %174 = arith.addf %170, %173 : vector<2x128xf32>
    %175 = math.tanh %174 : vector<2x128xf32>
    %cst_124 = arith.constant 1.000000e+00 : f32
    %176 = vector.broadcast %cst_124 : f32 to vector<2x128xf32>
    %177 = arith.subf %176, %169 : vector<2x128xf32>
    %178 = arith.mulf %177, %175 : vector<2x128xf32>
    %179 = arith.mulf %169, %149 : vector<2x128xf32>
    %180 = arith.addf %178, %179 : vector<2x128xf32>
    %c2_125 = arith.constant 2 : index
    %c0_126 = arith.constant 0 : index
    %c0_127 = arith.constant 0 : index
    %181 = vector.load %arg5[%c2_125, %c0_126, %c0_127] : memref<8x2x384xf32, #tpu.memory_space<vmem>>, vector<1x2x384xf32>
    %182 = vector.shape_cast %181 : vector<1x2x384xf32> to vector<2x384xf32>
    %183 = vector.extract_strided_slice %180 {offsets = [0, 0], sizes = [2, 32], strides = [1, 1]} : vector<2x128xf32> to vector<2x32xf32>
    %cst_128 = arith.constant dense<0.000000e+00> : vector<2x384xf32>
    %184 = tpu.matmul %183, %0, %cst_128 {dimension_numbers = #tpu.dot_dimension_numbers<[1], [0], [0], [1], [0, 0, 1, 1], [], []>} : vector<2x32xf32>, vector<32x384xf32>, vector<2x384xf32> -> vector<2x384xf32>
    %185 = vector.extract_strided_slice %182 {offsets = [0, 0], sizes = [2, 128], strides = [1, 1]} : vector<2x384xf32> to vector<2x128xf32>
    %186 = vector.extract_strided_slice %184 {offsets = [0, 0], sizes = [2, 128], strides = [1, 1]} : vector<2x384xf32> to vector<2x128xf32>
    %187 = arith.addf %185, %186 : vector<2x128xf32>
    %188 = arith.negf %187 : vector<2x128xf32>
    %189 = math.exp %188 : vector<2x128xf32>
    %cst_129 = arith.constant 1.000000e+00 : f32
    %190 = vector.broadcast %cst_129 : f32 to vector<2x128xf32>
    %191 = arith.addf %190, %189 : vector<2x128xf32>
    %192 = arith.divf %190, %191 : vector<2x128xf32>
    %193 = vector.extract_strided_slice %182 {offsets = [0, 128], sizes = [2, 128], strides = [1, 1]} : vector<2x384xf32> to vector<2x128xf32>
    %194 = vector.extract_strided_slice %184 {offsets = [0, 128], sizes = [2, 128], strides = [1, 1]} : vector<2x384xf32> to vector<2x128xf32>
    %195 = arith.addf %193, %194 : vector<2x128xf32>
    %196 = arith.negf %195 : vector<2x128xf32>
    %197 = math.exp %196 : vector<2x128xf32>
    %cst_130 = arith.constant 1.000000e+00 : f32
    %198 = vector.broadcast %cst_130 : f32 to vector<2x128xf32>
    %199 = arith.addf %198, %197 : vector<2x128xf32>
    %200 = arith.divf %198, %199 : vector<2x128xf32>
    %201 = vector.extract_strided_slice %182 {offsets = [0, 256], sizes = [2, 128], strides = [1, 1]} : vector<2x384xf32> to vector<2x128xf32>
    %202 = vector.extract_strided_slice %184 {offsets = [0, 256], sizes = [2, 128], strides = [1, 1]} : vector<2x384xf32> to vector<2x128xf32>
    %203 = arith.addf %202, %5 : vector<2x128xf32>
    %204 = arith.mulf %192, %203 : vector<2x128xf32>
    %205 = arith.addf %201, %204 : vector<2x128xf32>
    %206 = math.tanh %205 : vector<2x128xf32>
    %cst_131 = arith.constant 1.000000e+00 : f32
    %207 = vector.broadcast %cst_131 : f32 to vector<2x128xf32>
    %208 = arith.subf %207, %200 : vector<2x128xf32>
    %209 = arith.mulf %208, %206 : vector<2x128xf32>
    %210 = arith.mulf %200, %180 : vector<2x128xf32>
    %211 = arith.addf %209, %210 : vector<2x128xf32>
    %c3_132 = arith.constant 3 : index
    %c0_133 = arith.constant 0 : index
    %c0_134 = arith.constant 0 : index
    %212 = vector.load %arg5[%c3_132, %c0_133, %c0_134] : memref<8x2x384xf32, #tpu.memory_space<vmem>>, vector<1x2x384xf32>
    %213 = vector.shape_cast %212 : vector<1x2x384xf32> to vector<2x384xf32>
    %214 = vector.extract_strided_slice %211 {offsets = [0, 0], sizes = [2, 32], strides = [1, 1]} : vector<2x128xf32> to vector<2x32xf32>
    %cst_135 = arith.constant dense<0.000000e+00> : vector<2x384xf32>
    %215 = tpu.matmul %214, %0, %cst_135 {dimension_numbers = #tpu.dot_dimension_numbers<[1], [0], [0], [1], [0, 0, 1, 1], [], []>} : vector<2x32xf32>, vector<32x384xf32>, vector<2x384xf32> -> vector<2x384xf32>
    %216 = vector.extract_strided_slice %213 {offsets = [0, 0], sizes = [2, 128], strides = [1, 1]} : vector<2x384xf32> to vector<2x128xf32>
    %217 = vector.extract_strided_slice %215 {offsets = [0, 0], sizes = [2, 128], strides = [1, 1]} : vector<2x384xf32> to vector<2x128xf32>
    %218 = arith.addf %216, %217 : vector<2x128xf32>
    %219 = arith.negf %218 : vector<2x128xf32>
    %220 = math.exp %219 : vector<2x128xf32>
    %cst_136 = arith.constant 1.000000e+00 : f32
    %221 = vector.broadcast %cst_136 : f32 to vector<2x128xf32>
    %222 = arith.addf %221, %220 : vector<2x128xf32>
    %223 = arith.divf %221, %222 : vector<2x128xf32>
    %224 = vector.extract_strided_slice %213 {offsets = [0, 128], sizes = [2, 128], strides = [1, 1]} : vector<2x384xf32> to vector<2x128xf32>
    %225 = vector.extract_strided_slice %215 {offsets = [0, 128], sizes = [2, 128], strides = [1, 1]} : vector<2x384xf32> to vector<2x128xf32>
    %226 = arith.addf %224, %225 : vector<2x128xf32>
    %227 = arith.negf %226 : vector<2x128xf32>
    %228 = math.exp %227 : vector<2x128xf32>
    %cst_137 = arith.constant 1.000000e+00 : f32
    %229 = vector.broadcast %cst_137 : f32 to vector<2x128xf32>
    %230 = arith.addf %229, %228 : vector<2x128xf32>
    %231 = arith.divf %229, %230 : vector<2x128xf32>
    %232 = vector.extract_strided_slice %213 {offsets = [0, 256], sizes = [2, 128], strides = [1, 1]} : vector<2x384xf32> to vector<2x128xf32>
    %233 = vector.extract_strided_slice %215 {offsets = [0, 256], sizes = [2, 128], strides = [1, 1]} : vector<2x384xf32> to vector<2x128xf32>
    %234 = arith.addf %233, %5 : vector<2x128xf32>
    %235 = arith.mulf %223, %234 : vector<2x128xf32>
    %236 = arith.addf %232, %235 : vector<2x128xf32>
    %237 = math.tanh %236 : vector<2x128xf32>
    %cst_138 = arith.constant 1.000000e+00 : f32
    %238 = vector.broadcast %cst_138 : f32 to vector<2x128xf32>
    %239 = arith.subf %238, %231 : vector<2x128xf32>
    %240 = arith.mulf %239, %237 : vector<2x128xf32>
    %241 = arith.mulf %231, %211 : vector<2x128xf32>
    %242 = arith.addf %240, %241 : vector<2x128xf32>
    %c4_139 = arith.constant 4 : index
    %c0_140 = arith.constant 0 : index
    %c0_141 = arith.constant 0 : index
    %243 = vector.load %arg5[%c4_139, %c0_140, %c0_141] : memref<8x2x384xf32, #tpu.memory_space<vmem>>, vector<1x2x384xf32>
    %244 = vector.shape_cast %243 : vector<1x2x384xf32> to vector<2x384xf32>
    %245 = vector.extract_strided_slice %242 {offsets = [0, 0], sizes = [2, 32], strides = [1, 1]} : vector<2x128xf32> to vector<2x32xf32>
    %cst_142 = arith.constant dense<0.000000e+00> : vector<2x384xf32>
    %246 = tpu.matmul %245, %0, %cst_142 {dimension_numbers = #tpu.dot_dimension_numbers<[1], [0], [0], [1], [0, 0, 1, 1], [], []>} : vector<2x32xf32>, vector<32x384xf32>, vector<2x384xf32> -> vector<2x384xf32>
    %247 = vector.extract_strided_slice %244 {offsets = [0, 0], sizes = [2, 128], strides = [1, 1]} : vector<2x384xf32> to vector<2x128xf32>
    %248 = vector.extract_strided_slice %246 {offsets = [0, 0], sizes = [2, 128], strides = [1, 1]} : vector<2x384xf32> to vector<2x128xf32>
    %249 = arith.addf %247, %248 : vector<2x128xf32>
    %250 = arith.negf %249 : vector<2x128xf32>
    %251 = math.exp %250 : vector<2x128xf32>
    %cst_143 = arith.constant 1.000000e+00 : f32
    %252 = vector.broadcast %cst_143 : f32 to vector<2x128xf32>
    %253 = arith.addf %252, %251 : vector<2x128xf32>
    %254 = arith.divf %252, %253 : vector<2x128xf32>
    %255 = vector.extract_strided_slice %244 {offsets = [0, 128], sizes = [2, 128], strides = [1, 1]} : vector<2x384xf32> to vector<2x128xf32>
    %256 = vector.extract_strided_slice %246 {offsets = [0, 128], sizes = [2, 128], strides = [1, 1]} : vector<2x384xf32> to vector<2x128xf32>
    %257 = arith.addf %255, %256 : vector<2x128xf32>
    %258 = arith.negf %257 : vector<2x128xf32>
    %259 = math.exp %258 : vector<2x128xf32>
    %cst_144 = arith.constant 1.000000e+00 : f32
    %260 = vector.broadcast %cst_144 : f32 to vector<2x128xf32>
    %261 = arith.addf %260, %259 : vector<2x128xf32>
    %262 = arith.divf %260, %261 : vector<2x128xf32>
    %263 = vector.extract_strided_slice %244 {offsets = [0, 256], sizes = [2, 128], strides = [1, 1]} : vector<2x384xf32> to vector<2x128xf32>
    %264 = vector.extract_strided_slice %246 {offsets = [0, 256], sizes = [2, 128], strides = [1, 1]} : vector<2x384xf32> to vector<2x128xf32>
    %265 = arith.addf %264, %5 : vector<2x128xf32>
    %266 = arith.mulf %254, %265 : vector<2x128xf32>
    %267 = arith.addf %263, %266 : vector<2x128xf32>
    %268 = math.tanh %267 : vector<2x128xf32>
    %cst_145 = arith.constant 1.000000e+00 : f32
    %269 = vector.broadcast %cst_145 : f32 to vector<2x128xf32>
    %270 = arith.subf %269, %262 : vector<2x128xf32>
    %271 = arith.mulf %270, %268 : vector<2x128xf32>
    %272 = arith.mulf %262, %242 : vector<2x128xf32>
    %273 = arith.addf %271, %272 : vector<2x128xf32>
    %c5_146 = arith.constant 5 : index
    %c0_147 = arith.constant 0 : index
    %c0_148 = arith.constant 0 : index
    %274 = vector.load %arg5[%c5_146, %c0_147, %c0_148] : memref<8x2x384xf32, #tpu.memory_space<vmem>>, vector<1x2x384xf32>
    %275 = vector.shape_cast %274 : vector<1x2x384xf32> to vector<2x384xf32>
    %276 = vector.extract_strided_slice %273 {offsets = [0, 0], sizes = [2, 32], strides = [1, 1]} : vector<2x128xf32> to vector<2x32xf32>
    %cst_149 = arith.constant dense<0.000000e+00> : vector<2x384xf32>
    %277 = tpu.matmul %276, %0, %cst_149 {dimension_numbers = #tpu.dot_dimension_numbers<[1], [0], [0], [1], [0, 0, 1, 1], [], []>} : vector<2x32xf32>, vector<32x384xf32>, vector<2x384xf32> -> vector<2x384xf32>
    %278 = vector.extract_strided_slice %275 {offsets = [0, 0], sizes = [2, 128], strides = [1, 1]} : vector<2x384xf32> to vector<2x128xf32>
    %279 = vector.extract_strided_slice %277 {offsets = [0, 0], sizes = [2, 128], strides = [1, 1]} : vector<2x384xf32> to vector<2x128xf32>
    %280 = arith.addf %278, %279 : vector<2x128xf32>
    %281 = arith.negf %280 : vector<2x128xf32>
    %282 = math.exp %281 : vector<2x128xf32>
    %cst_150 = arith.constant 1.000000e+00 : f32
    %283 = vector.broadcast %cst_150 : f32 to vector<2x128xf32>
    %284 = arith.addf %283, %282 : vector<2x128xf32>
    %285 = arith.divf %283, %284 : vector<2x128xf32>
    %286 = vector.extract_strided_slice %275 {offsets = [0, 128], sizes = [2, 128], strides = [1, 1]} : vector<2x384xf32> to vector<2x128xf32>
    %287 = vector.extract_strided_slice %277 {offsets = [0, 128], sizes = [2, 128], strides = [1, 1]} : vector<2x384xf32> to vector<2x128xf32>
    %288 = arith.addf %286, %287 : vector<2x128xf32>
    %289 = arith.negf %288 : vector<2x128xf32>
    %290 = math.exp %289 : vector<2x128xf32>
    %cst_151 = arith.constant 1.000000e+00 : f32
    %291 = vector.broadcast %cst_151 : f32 to vector<2x128xf32>
    %292 = arith.addf %291, %290 : vector<2x128xf32>
    %293 = arith.divf %291, %292 : vector<2x128xf32>
    %294 = vector.extract_strided_slice %275 {offsets = [0, 256], sizes = [2, 128], strides = [1, 1]} : vector<2x384xf32> to vector<2x128xf32>
    %295 = vector.extract_strided_slice %277 {offsets = [0, 256], sizes = [2, 128], strides = [1, 1]} : vector<2x384xf32> to vector<2x128xf32>
    %296 = arith.addf %295, %5 : vector<2x128xf32>
    %297 = arith.mulf %285, %296 : vector<2x128xf32>
    %298 = arith.addf %294, %297 : vector<2x128xf32>
    %299 = math.tanh %298 : vector<2x128xf32>
    %cst_152 = arith.constant 1.000000e+00 : f32
    %300 = vector.broadcast %cst_152 : f32 to vector<2x128xf32>
    %301 = arith.subf %300, %293 : vector<2x128xf32>
    %302 = arith.mulf %301, %299 : vector<2x128xf32>
    %303 = arith.mulf %293, %273 : vector<2x128xf32>
    %304 = arith.addf %302, %303 : vector<2x128xf32>
    %c6_153 = arith.constant 6 : index
    %c0_154 = arith.constant 0 : index
    %c0_155 = arith.constant 0 : index
    %305 = vector.load %arg5[%c6_153, %c0_154, %c0_155] : memref<8x2x384xf32, #tpu.memory_space<vmem>>, vector<1x2x384xf32>
    %306 = vector.shape_cast %305 : vector<1x2x384xf32> to vector<2x384xf32>
    %307 = vector.extract_strided_slice %304 {offsets = [0, 0], sizes = [2, 32], strides = [1, 1]} : vector<2x128xf32> to vector<2x32xf32>
    %cst_156 = arith.constant dense<0.000000e+00> : vector<2x384xf32>
    %308 = tpu.matmul %307, %0, %cst_156 {dimension_numbers = #tpu.dot_dimension_numbers<[1], [0], [0], [1], [0, 0, 1, 1], [], []>} : vector<2x32xf32>, vector<32x384xf32>, vector<2x384xf32> -> vector<2x384xf32>
    %309 = vector.extract_strided_slice %306 {offsets = [0, 0], sizes = [2, 128], strides = [1, 1]} : vector<2x384xf32> to vector<2x128xf32>
    %310 = vector.extract_strided_slice %308 {offsets = [0, 0], sizes = [2, 128], strides = [1, 1]} : vector<2x384xf32> to vector<2x128xf32>
    %311 = arith.addf %309, %310 : vector<2x128xf32>
    %312 = arith.negf %311 : vector<2x128xf32>
    %313 = math.exp %312 : vector<2x128xf32>
    %cst_157 = arith.constant 1.000000e+00 : f32
    %314 = vector.broadcast %cst_157 : f32 to vector<2x128xf32>
    %315 = arith.addf %314, %313 : vector<2x128xf32>
    %316 = arith.divf %314, %315 : vector<2x128xf32>
    %317 = vector.extract_strided_slice %306 {offsets = [0, 128], sizes = [2, 128], strides = [1, 1]} : vector<2x384xf32> to vector<2x128xf32>
    %318 = vector.extract_strided_slice %308 {offsets = [0, 128], sizes = [2, 128], strides = [1, 1]} : vector<2x384xf32> to vector<2x128xf32>
    %319 = arith.addf %317, %318 : vector<2x128xf32>
    %320 = arith.negf %319 : vector<2x128xf32>
    %321 = math.exp %320 : vector<2x128xf32>
    %cst_158 = arith.constant 1.000000e+00 : f32
    %322 = vector.broadcast %cst_158 : f32 to vector<2x128xf32>
    %323 = arith.addf %322, %321 : vector<2x128xf32>
    %324 = arith.divf %322, %323 : vector<2x128xf32>
    %325 = vector.extract_strided_slice %306 {offsets = [0, 256], sizes = [2, 128], strides = [1, 1]} : vector<2x384xf32> to vector<2x128xf32>
    %326 = vector.extract_strided_slice %308 {offsets = [0, 256], sizes = [2, 128], strides = [1, 1]} : vector<2x384xf32> to vector<2x128xf32>
    %327 = arith.addf %326, %5 : vector<2x128xf32>
    %328 = arith.mulf %316, %327 : vector<2x128xf32>
    %329 = arith.addf %325, %328 : vector<2x128xf32>
    %330 = math.tanh %329 : vector<2x128xf32>
    %cst_159 = arith.constant 1.000000e+00 : f32
    %331 = vector.broadcast %cst_159 : f32 to vector<2x128xf32>
    %332 = arith.subf %331, %324 : vector<2x128xf32>
    %333 = arith.mulf %332, %330 : vector<2x128xf32>
    %334 = arith.mulf %324, %304 : vector<2x128xf32>
    %335 = arith.addf %333, %334 : vector<2x128xf32>
    %c7_160 = arith.constant 7 : index
    %c0_161 = arith.constant 0 : index
    %c0_162 = arith.constant 0 : index
    %336 = vector.load %arg5[%c7_160, %c0_161, %c0_162] : memref<8x2x384xf32, #tpu.memory_space<vmem>>, vector<1x2x384xf32>
    %337 = vector.shape_cast %336 : vector<1x2x384xf32> to vector<2x384xf32>
    %338 = vector.extract_strided_slice %335 {offsets = [0, 0], sizes = [2, 32], strides = [1, 1]} : vector<2x128xf32> to vector<2x32xf32>
    %cst_163 = arith.constant dense<0.000000e+00> : vector<2x384xf32>
    %339 = tpu.matmul %338, %0, %cst_163 {dimension_numbers = #tpu.dot_dimension_numbers<[1], [0], [0], [1], [0, 0, 1, 1], [], []>} : vector<2x32xf32>, vector<32x384xf32>, vector<2x384xf32> -> vector<2x384xf32>
    %340 = vector.extract_strided_slice %337 {offsets = [0, 0], sizes = [2, 128], strides = [1, 1]} : vector<2x384xf32> to vector<2x128xf32>
    %341 = vector.extract_strided_slice %339 {offsets = [0, 0], sizes = [2, 128], strides = [1, 1]} : vector<2x384xf32> to vector<2x128xf32>
    %342 = arith.addf %340, %341 : vector<2x128xf32>
    %343 = arith.negf %342 : vector<2x128xf32>
    %344 = math.exp %343 : vector<2x128xf32>
    %cst_164 = arith.constant 1.000000e+00 : f32
    %345 = vector.broadcast %cst_164 : f32 to vector<2x128xf32>
    %346 = arith.addf %345, %344 : vector<2x128xf32>
    %347 = arith.divf %345, %346 : vector<2x128xf32>
    %348 = vector.extract_strided_slice %337 {offsets = [0, 128], sizes = [2, 128], strides = [1, 1]} : vector<2x384xf32> to vector<2x128xf32>
    %349 = vector.extract_strided_slice %339 {offsets = [0, 128], sizes = [2, 128], strides = [1, 1]} : vector<2x384xf32> to vector<2x128xf32>
    %350 = arith.addf %348, %349 : vector<2x128xf32>
    %351 = arith.negf %350 : vector<2x128xf32>
    %352 = math.exp %351 : vector<2x128xf32>
    %cst_165 = arith.constant 1.000000e+00 : f32
    %353 = vector.broadcast %cst_165 : f32 to vector<2x128xf32>
    %354 = arith.addf %353, %352 : vector<2x128xf32>
    %355 = arith.divf %353, %354 : vector<2x128xf32>
    %356 = vector.extract_strided_slice %337 {offsets = [0, 256], sizes = [2, 128], strides = [1, 1]} : vector<2x384xf32> to vector<2x128xf32>
    %357 = vector.extract_strided_slice %339 {offsets = [0, 256], sizes = [2, 128], strides = [1, 1]} : vector<2x384xf32> to vector<2x128xf32>
    %358 = arith.addf %357, %5 : vector<2x128xf32>
    %359 = arith.mulf %347, %358 : vector<2x128xf32>
    %360 = arith.addf %356, %359 : vector<2x128xf32>
    %361 = math.tanh %360 : vector<2x128xf32>
    %cst_166 = arith.constant 1.000000e+00 : f32
    %362 = vector.broadcast %cst_166 : f32 to vector<2x128xf32>
    %363 = arith.subf %362, %355 : vector<2x128xf32>
    %364 = arith.mulf %363, %361 : vector<2x128xf32>
    %365 = arith.mulf %355, %335 : vector<2x128xf32>
    %366 = arith.addf %364, %365 : vector<2x128xf32>
    %367 = vector.extract_strided_slice %366 {offsets = [0, 0], sizes = [2, 32], strides = [1, 1]} : vector<2x128xf32> to vector<2x32xf32>
    %cst_167 = arith.constant dense<0.000000e+00> : vector<2x20xf32>
    %368 = tpu.matmul %367, %2, %cst_167 {dimension_numbers = #tpu.dot_dimension_numbers<[1], [0], [0], [1], [0, 0, 1, 1], [], []>} : vector<2x32xf32>, vector<32x20xf32>, vector<2x20xf32> -> vector<2x20xf32>
    %369 = vector.broadcast %3 : vector<1x20xf32> to vector<2x20xf32>
    %370 = arith.addf %368, %369 : vector<2x20xf32>
    %cst_168 = arith.constant dense<0xFF800000> : vector<2xf32>
    %371 = vector.multi_reduction <maximumf>, %370, %cst_168 [1] : vector<2x20xf32> to vector<2xf32>
    %372 = vector.shape_cast %371 : vector<2xf32> to vector<2x1xf32>
    %373 = vector.broadcast %372 : vector<2x1xf32> to vector<2x20xf32>
    %374 = arith.subf %370, %373 : vector<2x20xf32>
    %375 = math.exp %374 : vector<2x20xf32>
    %cst_169 = arith.constant dense<0.000000e+00> : vector<2xf32>
    %376 = vector.multi_reduction <add>, %375, %cst_169 [1] : vector<2x20xf32> to vector<2xf32>
    %377 = vector.shape_cast %376 : vector<2xf32> to vector<2x1xf32>
    %378 = math.log %377 : vector<2x1xf32>
    %379 = vector.broadcast %378 : vector<2x1xf32> to vector<2x20xf32>
    %380 = arith.subf %374, %379 : vector<2x20xf32>
    %c0_170 = arith.constant 0 : index
    %c0_171 = arith.constant 0 : index
    %381 = vector.load %arg4[%c0_170, %c0_171] : memref<2x20xf32, #tpu.memory_space<vmem>>, vector<2x20xf32>
    tpu.vector_store %arg4[%c0_170, %c0_171], %380 {strides = array<i32>} : memref<2x20xf32, #tpu.memory_space<vmem>>, vector<2x20xf32>,
    return
  }
}

</mosaic_0001>

<llo_original>
// kernel: tpu_custom_call.1
$region0: #{tpu_custom_call.1}
  #allocation0 [shape = 'u32[]', space=smem, size = 0x4, offset = 0x4, fixed_abs, tag = 'smem constant byte address 0x4 - core index']
  #allocation1 [shape = 'u32[144,128]{1,0:T(1,128)}', space=vmem, size = 0x12000, scoped, tag = 'internal scratch']
  #allocation2 [shape = 'f32[8,2,384]{2,1,0:T(2,128)}', space=vmem, size = 0x6000, scoped, tag = 'scratch operand']
  %s0 = inlined_call_operand.vmem [shape: s32[2,8], index: 0, kind: input, shape index: {}]
  %s1 = inlined_call_operand.vmem [shape: f32[20,1,384], index: 1, kind: input, shape index: {}]
  %s2 = inlined_call_operand.hbm [shape: f32[40,384], index: 2, kind: input, shape index: {}]
  %s3 = inlined_call_operand.vmem [shape: f32[40,20], index: 3, kind: input, shape index: {}]
  %s4 = inlined_call_operand.hbm [shape: f32[2,20], index: 4, kind: output, shape index: {}]
  %s5 = sld [smem:[#allocation0]]
  $region34: #{tpu_custom_call.1} parent=0
    _
  %s7 = ssub.s32 1, %s5
  %s8 = scalar_select 0, %s7, %s5
  $region1: #{tpu_custom_call.1} parent=0
    #allocation3 [shape = 'u8[1024]{0}', space=smem, size = 0x400, scoped, tag = 'input window, operand 0, single buffered']
    #allocation4 [shape = 's32[1]{0}', space=sflag, size = 0x4, scoped, tag = 'scoped memory for tpu_custom_call.1']
    #allocation5 [shape = 's32[1]{0}', space=sflag, size = 0x4, scoped, tag = 'scoped memory for tpu_custom_call.1']
    #allocation6 [shape = 's32[1]{0}', space=sflag, size = 0x4, scoped, tag = 'scoped memory for tpu_custom_call.1']
    #allocation7 [shape = 'u8[61440]{0}', space=vmem, size = 0xf000, scoped, tag = 'input window, operand 2, single buffered']
    #allocation8 [shape = 'u8[1024]{0}', space=vmem, size = 0x400, scoped, tag = 'output window, operand 0, single buffered']
    %9 = vsyncpa [#allocation6], 0
    %10 = vsyncpa [#allocation4], 0
    %11 = vsyncpa [#allocation5], 0
    // Predicated region
    $region2: #{tpu_custom_call.1} parent=1 // pred_check
      _
    $region3: #{tpu_custom_call.1} parent=1 // pred_check_branch
      %13 = sbr.rel (0) target = $region5
    $region4: #{tpu_custom_call.1} parent=1 // pred_region
      %s15 = ssub.s32 32, 32
      %16 = vsyncadd [#allocation6], %s15
      %s18 = sshll.u32 %s0, 4
      %s19 = int_to_ptr.vmem [resolvable:$true] %s18
      %21 = dma.vmem_to_smem %s19, 32, [#allocation3], [#allocation6]
    $region5: #{tpu_custom_call.1} parent=1 // pred_fallthru
      _
    // Predicated region
    $region6: #{tpu_custom_call.1} parent=1 // pred_check
      _
    $region7: #{tpu_custom_call.1} parent=1 // pred_check_branch
      %23 = sbr.rel (0) target = $region9
    $region8: #{tpu_custom_call.1} parent=1 // pred_region
      _
    $region9: #{tpu_custom_call.1} parent=1 // pred_fallthru
      _
    // Predicated region
    $region10: #{tpu_custom_call.1} parent=1 // pred_check
      _
    $region11: #{tpu_custom_call.1} parent=1 // pred_check_branch
      %25 = sbr.rel (0) target = $region13
    $region12: #{tpu_custom_call.1} parent=1 // pred_region
      %s27 = ssub.s32 1920, 1920
      %28 = vsyncadd [#allocation4], %s27
      %s29 = sshll.u32 [#allocation7], 4
      %s30 = int_to_ptr.vmem [resolvable:$true] %s29
      %35 = dma.hbm_to_vmem [thread:$0]  %s2, 1920, %s30, [#allocation4], 384, 384, 24
    $region13: #{tpu_custom_call.1} parent=1 // pred_fallthru
      _
    // Predicated region
    $region14: #{tpu_custom_call.1} parent=1 // pred_check
      _
    $region15: #{tpu_custom_call.1} parent=1 // pred_check_branch
      %37 = sbr.rel (0) target = $region17
    $region16: #{tpu_custom_call.1} parent=1 // pred_region
      _
    $region17: #{tpu_custom_call.1} parent=1 // pred_fallthru
      _
    // Predicated region
    $region18: #{tpu_custom_call.1} parent=1 // pred_check
      _
    $region19: #{tpu_custom_call.1} parent=1 // pred_check_branch
      %39 = sbr.rel (0) target = $region21
    $region20: #{tpu_custom_call.1} parent=1 // pred_region
      %40 = dma.done [#allocation6], 32
    $region21: #{tpu_custom_call.1} parent=1 // pred_fallthru
      _
    // Predicated region
    $region22: #{tpu_custom_call.1} parent=1 // pred_check
      _
    $region23: #{tpu_custom_call.1} parent=1 // pred_check_branch
      %42 = sbr.rel (0) target = $region25
    $region24: #{tpu_custom_call.1} parent=1 // pred_region
      %43 = dma.done [#allocation4], 1920
    $region25: #{tpu_custom_call.1} parent=1 // pred_fallthru
      _
    %44 = sfence
    %v45 = vld [vmem:[#allocation7] sm:$0xff]
    %v46 = vld [vmem:[#allocation7 + $0x8] sm:$0xff]
    %v47 = vld [vmem:[#allocation7 + $0x10] sm:$0xff]
    %v48 = vld [vmem:[#allocation7 + $0x18] sm:$0xff]
    %v49 = vld [vmem:[#allocation7 + $0x20] sm:$0xff]
    %v50 = vld [vmem:[#allocation7 + $0x28] sm:$0xff]
    %v51 = vld [vmem:[#allocation7 + $0x30] sm:$0xff]
    %v52 = vld [vmem:[#allocation7 + $0x38] sm:$0xff]
    %v53 = vld [vmem:[#allocation7 + $0x40] sm:$0xff]
    %v54 = vld [vmem:[#allocation7 + $0x48] sm:$0xff]
    %v55 = vld [vmem:[#allocation7 + $0x50] sm:$0xff]
    %v56 = vld [vmem:[#allocation7 + $0x58] sm:$0xff]
    %v57 = vld [vmem:[#allocation7 + $0x60] ss:$0 sm:$0xff]
    %v58 = vld [vmem:[%s3] sm:$0xff]
    %v59 = vld [vmem:[%s3 + $0x8] sm:$0xff]
    %v60 = vld [vmem:[%s3 + $0x10] sm:$0xff]
    %v61 = vld [vmem:[%s3 + $0x18] sm:$0xff]
    %v62 = vld [vmem:[%s3 + $0x20] sm:$0x1]
    %s63 = sld [smem:[#allocation3]]
    %s64 = smul.u32 %s63, 3
    %s65 = scalar_lea.vmem %s1, %s64
    %v66 = vld [vmem:[%s65] sm:$0x7]
    %v67 = vlaneseq
    %vm68 = vcmp.ge.s32.totalorder %v67, 0
    %vm69 = vcmp.lt.s32.totalorder %v67, 384
    %vm70 = vmand %vm68, %vm69
    %71 = vst.msk [vmem:[#allocation2] ss:$2 sm:$0x7] %vm70, %v66
    %s72 = sld [smem:[#allocation3 + $0x80]]
    %s73 = smul.u32 %s72, 3
    %s74 = scalar_lea.vmem %s1, %s73
    %v75 = vld [vmem:[%s74] sm:$0x7]
    %s76 = scalar_lea.vmem [#allocation2], 1
    %77 = vst.msk [vmem:[%s76] ss:$2 sm:$0x7] %vm70, %v75
    %s78 = sld [smem:[#allocation3 + $0x1]]
    %s79 = smul.u32 %s78, 3
    %s80 = scalar_lea.vmem %s1, %s79
    %v81 = vld [vmem:[%s80] sm:$0x7]
    %s82 = scalar_lea.vmem [#allocation2], 6
    %83 = vst.msk [vmem:[%s82] ss:$2 sm:$0x7] %vm70, %v81
    %s84 = sld [smem:[#allocation3 + $0x81]]
    %s85 = smul.u32 %s84, 3
    %s86 = scalar_lea.vmem %s1, %s85
    %v87 = vld [vmem:[%s86] sm:$0x7]
    %s88 = scalar_lea.vmem %s82, 1 [#allocation2]
    %89 = vst.msk [vmem:[%s88] ss:$2 sm:$0x7] %vm70, %v87
    %s90 = sld [smem:[#allocation3 + $0x2]]
    %s91 = smul.u32 %s90, 3
    %s92 = scalar_lea.vmem %s1, %s91
    %v93 = vld [vmem:[%s92] sm:$0x7]
    %s94 = scalar_lea.vmem [#allocation2], 12
    %95 = vst.msk [vmem:[%s94] ss:$2 sm:$0x7] %vm70, %v93
    %s96 = sld [smem:[#allocation3 + $0x82]]
    %s97 = smul.u32 %s96, 3
    %s98 = scalar_lea.vmem %s1, %s97
    %v99 = vld [vmem:[%s98] sm:$0x7]
    %s100 = scalar_lea.vmem %s94, 1 [#allocation2]
    %101 = vst.msk [vmem:[%s100] ss:$2 sm:$0x7] %vm70, %v99
    %s102 = sld [smem:[#allocation3 + $0x3]]
    %s103 = smul.u32 %s102, 3
    %s104 = scalar_lea.vmem %s1, %s103
    %v105 = vld [vmem:[%s104] sm:$0x7]
    %s106 = scalar_lea.vmem [#allocation2], 18
    %107 = vst.msk [vmem:[%s106] ss:$2 sm:$0x7] %vm70, %v105
    %s108 = sld [smem:[#allocation3 + $0x83]]
    %s109 = smul.u32 %s108, 3
    %s110 = scalar_lea.vmem %s1, %s109
    %v111 = vld [vmem:[%s110] sm:$0x7]
    %s112 = scalar_lea.vmem %s106, 1 [#allocation2]
    %113 = vst.msk [vmem:[%s112] ss:$2 sm:$0x7] %vm70, %v111
    %s114 = sld [smem:[#allocation3 + $0x4]]
    %s115 = smul.u32 %s114, 3
    %s116 = scalar_lea.vmem %s1, %s115
    %v117 = vld [vmem:[%s116] sm:$0x7]
    %s118 = scalar_lea.vmem [#allocation2], 24
    %119 = vst.msk [vmem:[%s118] ss:$2 sm:$0x7] %vm70, %v117
    %s120 = sld [smem:[#allocation3 + $0x84]]
    %s121 = smul.u32 %s120, 3
    %s122 = scalar_lea.vmem %s1, %s121
    %v123 = vld [vmem:[%s122] sm:$0x7]
    %s124 = scalar_lea.vmem %s118, 1 [#allocation2]
    %125 = vst.msk [vmem:[%s124] ss:$2 sm:$0x7] %vm70, %v123
    %s126 = sld [smem:[#allocation3 + $0x5]]
    %s127 = smul.u32 %s126, 3
    %s128 = scalar_lea.vmem %s1, %s127
    %v129 = vld [vmem:[%s128] sm:$0x7]
    %s130 = scalar_lea.vmem [#allocation2], 30
    %131 = vst.msk [vmem:[%s130] ss:$2 sm:$0x7] %vm70, %v129
    %s132 = sld [smem:[#allocation3 + $0x85]]
    %s133 = smul.u32 %s132, 3
    %s134 = scalar_lea.vmem %s1, %s133
    %v135 = vld [vmem:[%s134] sm:$0x7]
    %s136 = scalar_lea.vmem %s130, 1 [#allocation2]
    %137 = vst.msk [vmem:[%s136] ss:$2 sm:$0x7] %vm70, %v135
    %s138 = sld [smem:[#allocation3 + $0x6]]
    %s139 = smul.u32 %s138, 3
    %s140 = scalar_lea.vmem %s1, %s139
    %v141 = vld [vmem:[%s140] sm:$0x7]
    %s142 = scalar_lea.vmem [#allocation2], 36
    %143 = vst.msk [vmem:[%s142] ss:$2 sm:$0x7] %vm70, %v141
    %s144 = sld [smem:[#allocation3 + $0x86]]
    %s145 = smul.u32 %s144, 3
    %s146 = scalar_lea.vmem %s1, %s145
    %v147 = vld [vmem:[%s146] sm:$0x7]
    %s148 = scalar_lea.vmem %s142, 1 [#allocation2]
    %149 = vst.msk [vmem:[%s148] ss:$2 sm:$0x7] %vm70, %v147
    %s150 = sld [smem:[#allocation3 + $0x7]]
    %s151 = smul.u32 %s150, 3
    %s152 = scalar_lea.vmem %s1, %s151
    %v153 = vld [vmem:[%s152] sm:$0x7]
    %s154 = scalar_lea.vmem [#allocation2], 42
    %155 = vst.msk [vmem:[%s154] ss:$2 sm:$0x7] %vm70, %v153
    %s156 = sld [smem:[#allocation3 + $0x87]]
    %s157 = smul.u32 %s156, 3
    %s158 = scalar_lea.vmem %s1, %s157
    %v159 = vld [vmem:[%s158] sm:$0x7]
    %s160 = scalar_lea.vmem %s154, 1 [#allocation2]
    %161 = vst.msk [vmem:[%s160] ss:$2 sm:$0x7] %vm70, %v159
    %v162 = vld [vmem:[#allocation2] sm:$0x3f]
    %vm163 = vcmask 261120
    %v165 = vsel %vm163, 0.0, 0
    %167 = vmatprep.subr.mxu0 0.0
    %168 = vmatpush1.msra.mxu0 0.0
    %169 = vmatprep.subr.mxu0 0.0
    %170 = vmatpush1.msra.mxu0 0.0
    %171 = vmatprep.subr.mxu0 0.0
    %172 = vmatpush1.msra.mxu0 0.0
    %173 = vmatprep.subr.mxu0 0.0
    %174 = vmatpush1.msra.mxu0 0.0
    %175 = vmatprep.subr.mxu0 0.0
    %176 = vmatpush1.msra.mxu0 0.0
    %177 = vmatprep.subr.mxu0 0.0
    %178 = vmatpush1.msra.mxu0 0.0
    %179 = vmatprep.subr.mxu0 0.0
    %180 = vmatpush1.msra.mxu0 0.0
    %181 = vmatprep.subr.mxu0 0.0
    %182 = vmatpush1.msra.mxu0 0.0
    %183 = vmatprep.subr.mxu0 0.0
    %184 = vmatpush1.msra.mxu0 0.0
    %185 = vmatprep.subr.mxu0 0.0
    %186 = vmatpush1.msra.mxu0 0.0
    %187 = vmatprep.subr.mxu0 0.0
    %188 = vmatpush1.msra.mxu0 0.0
    %189 = vmatprep.subr.mxu0 0.0
    %190 = vmatpush1.msra.mxu0 0.0
    %191 = vmatprep.subr.mxu0 %v55
    %192 = vmatpush1.msra.mxu0 %v54
    %193 = vmatprep.subr.mxu0 %v52
    %194 = vmatpush1.msra.mxu0 %v51
    %195 = vmatprep.subr.mxu0 %v49
    %196 = vmatpush1.msra.mxu0 %v48
    %197 = vmatprep.subr.mxu0 %v46
    %198 = vmatpush1.msra.mxu0 %v45
    %199 = vmatprep.subr.mxu0 0.0
    %200 = vmatpush2.msra.mxu0 0.0
    %201 = vmatprep.subr.mxu0 0.0
    %202 = vmatpush2.msra.mxu0 0.0
    %203 = vmatprep.subr.mxu0 0.0
    %204 = vmatpush2.msra.mxu0 0.0
    %205 = vmatprep.subr.mxu0 0.0
    %206 = vmatpush2.msra.mxu0 0.0
    %207 = vmatprep.subr.mxu0 0.0
    %208 = vmatpush2.msra.mxu0 0.0
    %209 = vmatprep.subr.mxu0 0.0
    %210 = vmatpush2.msra.mxu0 0.0
    %211 = vmatprep.subr.mxu0 0.0
    %212 = vmatpush2.msra.mxu0 0.0
    %213 = vmatprep.subr.mxu0 0.0
    %214 = vmatpush2.msra.mxu0 0.0
    %215 = vmatprep.subr.mxu0 0.0
    %216 = vmatpush2.msra.mxu0 0.0
    %217 = vmatprep.subr.mxu0 0.0
    %218 = vmatpush2.msra.mxu0 0.0
    %219 = vmatprep.subr.mxu0 0.0
    %220 = vmatpush2.msra.mxu0 0.0
    %221 = vmatprep.subr.mxu0 0.0
    %222 = vmatpush2.msra.mxu0 0.0
    %223 = vmatprep.subr.mxu0 0.0
    %224 = vmatpush2.msra.mxu0 0.0
    %225 = vmatprep.subr.mxu0 0.0
    %226 = vmatpush2.msra.mxu0 0.0
    %227 = vmatprep.subr.mxu0 0.0
    %228 = vmatpush2.msra.mxu0 0.0
    %229 = vmatprep.subr.mxu0 0.0
    %230 = vmatpush2.msra.mxu0 0.0
    %231 = vmatprep.mubr.f32.mxu0 0.0
    %232 = vmatmul.mubr.f32.gmra.mxu0 %v165
    %v233 = vpop.f32.mrf.mxu0
    %v234 = vadd.f32 0.0, %v233
    %v235 = vpop.f32.mrf.mxu0
    %v236 = vadd.f32 0.0, %v235
    %237 = vdwg.mxu0
    %238 = vmatprep.subr.mxu0 0.0
    %239 = vmatpush1.msra.mxu0 0.0
    %240 = vmatprep.subr.mxu0 0.0
    %241 = vmatpush1.msra.mxu0 0.0
    %242 = vmatprep.subr.mxu0 0.0
    %243 = vmatpush1.msra.mxu0 0.0
    %244 = vmatprep.subr.mxu0 0.0
    %245 = vmatpush1.msra.mxu0 0.0
    %246 = vmatprep.subr.mxu0 0.0
    %247 = vmatpush1.msra.mxu0 0.0
    %248 = vmatprep.subr.mxu0 0.0
    %249 = vmatpush1.msra.mxu0 0.0
    %250 = vmatprep.subr.mxu0 0.0
    %251 = vmatpush1.msra.mxu0 0.0
    %252 = vmatprep.subr.mxu0 0.0
    %253 = vmatpush1.msra.mxu0 0.0
    %254 = vmatprep.subr.mxu0 0.0
    %255 = vmatpush1.msra.mxu0 0.0
    %256 = vmatprep.subr.mxu0 0.0
    %257 = vmatpush1.msra.mxu0 0.0
    %258 = vmatprep.subr.mxu0 0.0
    %259 = vmatpush1.msra.mxu0 0.0
    %260 = vmatprep.subr.mxu0 0.0
    %261 = vmatpush1.msra.mxu0 0.0
    %262 = vmatprep.subr.mxu0 0.0
    %263 = vmatpush1.msra.mxu0 %v56
    %264 = vmatprep.subr.mxu0 0.0
    %265 = vmatpush1.msra.mxu0 %v53
    %266 = vmatprep.subr.mxu0 0.0
    %267 = vmatpush1.msra.mxu0 %v50
    %268 = vmatprep.subr.mxu0 0.0
    %269 = vmatpush1.msra.mxu0 %v47
    %270 = vmatprep.subr.mxu0 0.0
    %271 = vmatpush2.msra.mxu0 0.0
    %272 = vmatprep.subr.mxu0 0.0
    %273 = vmatpush2.msra.mxu0 0.0
    %274 = vmatprep.subr.mxu0 0.0
    %275 = vmatpush2.msra.mxu0 0.0
    %276 = vmatprep.subr.mxu0 0.0
    %277 = vmatpush2.msra.mxu0 0.0
    %278 = vmatprep.subr.mxu0 0.0
    %279 = vmatpush2.msra.mxu0 0.0
    %280 = vmatprep.subr.mxu0 0.0
    %281 = vmatpush2.msra.mxu0 0.0
    %282 = vmatprep.subr.mxu0 0.0
    %283 = vmatpush2.msra.mxu0 0.0
    %284 = vmatprep.subr.mxu0 0.0
    %285 = vmatpush2.msra.mxu0 0.0
    %286 = vmatprep.subr.mxu0 0.0
    %287 = vmatpush2.msra.mxu0 0.0
    %288 = vmatprep.subr.mxu0 0.0
    %289 = vmatpush2.msra.mxu0 0.0
    %290 = vmatprep.subr.mxu0 0.0
    %291 = vmatpush2.msra.mxu0 0.0
    %292 = vmatprep.subr.mxu0 0.0
    %293 = vmatpush2.msra.mxu0 0.0
    %294 = vmatprep.subr.mxu0 0.0
    %295 = vmatpush2.msra.mxu0 0.0
    %296 = vmatprep.subr.mxu0 0.0
    %297 = vmatpush2.msra.mxu0 0.0
    %298 = vmatprep.subr.mxu0 0.0
    %299 = vmatpush2.msra.mxu0 0.0
    %300 = vmatprep.subr.mxu0 0.0
    %301 = vmatpush2.msra.mxu0 0.0
    %302 = vmatprep.mubr.f32.mxu0 0.0
    %303 = vmatmul.mubr.f32.gmra.mxu0 %v165
    %v304 = vpop.f32.mrf.mxu0
    %v305 = vadd.f32 0.0, %v304
    %v306 = vpop.f32.mrf.mxu0
    %307 = vdwg.mxu0
    %v308 = vadd.f32 %v162, %v234
    %v309 = vxor.u32 %v308, 2147483648
    %v310 = vmul.f32 %v309, 1.442695
    %v311 = vpow.pop %v310
    %v312 = vadd.f32 %v311, 1.0
    %v313 = vrcp.pop %v312
    %v314 = vmul.f32 1.0, %v313
    %v316 = vrot.slane %v162, 2
    %v318 = vadd.f32 %v316, %v236
    %v319 = vxor.u32 %v318, 2147483648
    %v320 = vmul.f32 %v319, 1.442695
    %v321 = vpow.pop %v320
    %v322 = vadd.f32 %v321, 1.0
    %v323 = vrcp.pop %v322
    %v324 = vmul.f32 1.0, %v323
    %v325 = vadd.f32 %v305, %v57
    %v326 = vmul.f32 %v314, %v325
    %v327 = vrot.slane %v162, 4
    %v329 = vadd.f32 %v327, %v326
    %v330 = vtanh.pop %v329
    %v331 = vsub.f32 1.0, %v324
    %v332 = vmul.f32 %v331, %v330
    %v333 = vmul.f32 %v324, 0.0
    %v334 = vadd.f32 %v332, %v333
    %v335 = vld [vmem:[%s82] sm:$0x3f]
    %v337 = vsel %vm163, %v334, 0
    %339 = vmatprep.subr.mxu0 0.0
    %340 = vmatpush1.msra.mxu0 0.0
    %341 = vmatprep.subr.mxu0 0.0
    %342 = vmatpush1.msra.mxu0 0.0
    %343 = vmatprep.subr.mxu0 0.0
    %344 = vmatpush1.msra.mxu0 0.0
    %345 = vmatprep.subr.mxu0 0.0
    %346 = vmatpush1.msra.mxu0 0.0
    %347 = vmatprep.subr.mxu0 0.0
    %348 = vmatpush1.msra.mxu0 0.0
    %349 = vmatprep.subr.mxu0 0.0
    %350 = vmatpush1.msra.mxu0 0.0
    %351 = vmatprep.subr.mxu0 0.0
    %352 = vmatpush1.msra.mxu0 0.0
    %353 = vmatprep.subr.mxu0 0.0
    %354 = vmatpush1.msra.mxu0 0.0
    %355 = vmatprep.subr.mxu0 0.0
    %356 = vmatpush1.msra.mxu0 0.0
    %357 = vmatprep.subr.mxu0 0.0
    %358 = vmatpush1.msra.mxu0 0.0
    %359 = vmatprep.subr.mxu0 0.0
    %360 = vmatpush1.msra.mxu0 0.0
    %361 = vmatprep.subr.mxu0 0.0
    %362 = vmatpush1.msra.mxu0 0.0
    %363 = vmatprep.subr.mxu0 %v55
    %364 = vmatpush1.msra.mxu0 %v54
    %365 = vmatprep.subr.mxu0 %v52
    %366 = vmatpush1.msra.mxu0 %v51
    %367 = vmatprep.subr.mxu0 %v49
    %368 = vmatpush1.msra.mxu0 %v48
    %369 = vmatprep.subr.mxu0 %v46
    %370 = vmatpush1.msra.mxu0 %v45
    %371 = vmatprep.subr.mxu0 0.0
    %372 = vmatpush2.msra.mxu0 0.0
    %373 = vmatprep.subr.mxu0 0.0
    %374 = vmatpush2.msra.mxu0 0.0
    %375 = vmatprep.subr.mxu0 0.0
    %376 = vmatpush2.msra.mxu0 0.0
    %377 = vmatprep.subr.mxu0 0.0
    %378 = vmatpush2.msra.mxu0 0.0
    %379 = vmatprep.subr.mxu0 0.0
    %380 = vmatpush2.msra.mxu0 0.0
    %381 = vmatprep.subr.mxu0 0.0
    %382 = vmatpush2.msra.mxu0 0.0
    %383 = vmatprep.subr.mxu0 0.0
    %384 = vmatpush2.msra.mxu0 0.0
    %385 = vmatprep.subr.mxu0 0.0
    %386 = vmatpush2.msra.mxu0 0.0
    %387 = vmatprep.subr.mxu0 0.0
    %388 = vmatpush2.msra.mxu0 0.0
    %389 = vmatprep.subr.mxu0 0.0
    %390 = vmatpush2.msra.mxu0 0.0
    %391 = vmatprep.subr.mxu0 0.0
    %392 = vmatpush2.msra.mxu0 0.0
    %393 = vmatprep.subr.mxu0 0.0
    %394 = vmatpush2.msra.mxu0 0.0
    %395 = vmatprep.subr.mxu0 0.0
    %396 = vmatpush2.msra.mxu0 0.0
    %397 = vmatprep.subr.mxu0 0.0
    %398 = vmatpush2.msra.mxu0 0.0
    %399 = vmatprep.subr.mxu0 0.0
    %400 = vmatpush2.msra.mxu0 0.0
    %401 = vmatprep.subr.mxu0 0.0
    %402 = vmatpush2.msra.mxu0 0.0
    %403 = vmatprep.mubr.f32.mxu0 0.0
    %404 = vmatmul.mubr.f32.gmra.mxu0 %v337
    %v405 = vpop.f32.mrf.mxu0
    %v406 = vadd.f32 0.0, %v405
    %v407 = vpop.f32.mrf.mxu0
    %v408 = vadd.f32 0.0, %v407
    %409 = vdwg.mxu0
    %410 = vmatprep.subr.mxu0 0.0
    %411 = vmatpush1.msra.mxu0 0.0
    %412 = vmatprep.subr.mxu0 0.0
    %413 = vmatpush1.msra.mxu0 0.0
    %414 = vmatprep.subr.mxu0 0.0
    %415 = vmatpush1.msra.mxu0 0.0
    %416 = vmatprep.subr.mxu0 0.0
    %417 = vmatpush1.msra.mxu0 0.0
    %418 = vmatprep.subr.mxu0 0.0
    %419 = vmatpush1.msra.mxu0 0.0
    %420 = vmatprep.subr.mxu0 0.0
    %421 = vmatpush1.msra.mxu0 0.0
    %422 = vmatprep.subr.mxu0 0.0
    %423 = vmatpush1.msra.mxu0 0.0
    %424 = vmatprep.subr.mxu0 0.0
    %425 = vmatpush1.msra.mxu0 0.0
    %426 = vmatprep.subr.mxu0 0.0
    %427 = vmatpush1.msra.mxu0 0.0
    %428 = vmatprep.subr.mxu0 0.0
    %429 = vmatpush1.msra.mxu0 0.0
    %430 = vmatprep.subr.mxu0 0.0
    %431 = vmatpush1.msra.mxu0 0.0
    %432 = vmatprep.subr.mxu0 0.0
    %433 = vmatpush1.msra.mxu0 0.0
    %434 = vmatprep.subr.mxu0 0.0
    %435 = vmatpush1.msra.mxu0 %v56
    %436 = vmatprep.subr.mxu0 0.0
    %437 = vmatpush1.msra.mxu0 %v53
    %438 = vmatprep.subr.mxu0 0.0
    %439 = vmatpush1.msra.mxu0 %v50
    %440 = vmatprep.subr.mxu0 0.0
    %441 = vmatpush1.msra.mxu0 %v47
    %442 = vmatprep.subr.mxu0 0.0
    %443 = vmatpush2.msra.mxu0 0.0
    %444 = vmatprep.subr.mxu0 0.0
    %445 = vmatpush2.msra.mxu0 0.0
    %446 = vmatprep.subr.mxu0 0.0
    %447 = vmatpush2.msra.mxu0 0.0
    %448 = vmatprep.subr.mxu0 0.0
    %449 = vmatpush2.msra.mxu0 0.0
    %450 = vmatprep.subr.mxu0 0.0
    %451 = vmatpush2.msra.mxu0 0.0
    %452 = vmatprep.subr.mxu0 0.0
    %453 = vmatpush2.msra.mxu0 0.0
    %454 = vmatprep.subr.mxu0 0.0
    %455 = vmatpush2.msra.mxu0 0.0
    %456 = vmatprep.subr.mxu0 0.0
    %457 = vmatpush2.msra.mxu0 0.0
    %458 = vmatprep.subr.mxu0 0.0
    %459 = vmatpush2.msra.mxu0 0.0
    %460 = vmatprep.subr.mxu0 0.0
    %461 = vmatpush2.msra.mxu0 0.0
    %462 = vmatprep.subr.mxu0 0.0
    %463 = vmatpush2.msra.mxu0 0.0
    %464 = vmatprep.subr.mxu0 0.0
    %465 = vmatpush2.msra.mxu0 0.0
    %466 = vmatprep.subr.mxu0 0.0
    %467 = vmatpush2.msra.mxu0 0.0
    %468 = vmatprep.subr.mxu0 0.0
    %469 = vmatpush2.msra.mxu0 0.0
    %470 = vmatprep.subr.mxu0 0.0
    %471 = vmatpush2.msra.mxu0 0.0
    %472 = vmatprep.subr.mxu0 0.0
    %473 = vmatpush2.msra.mxu0 0.0
    %474 = vmatprep.mubr.f32.mxu0 0.0
    %475 = vmatmul.mubr.f32.gmra.mxu0 %v337
    %v476 = vpop.f32.mrf.mxu0
    %v477 = vadd.f32 0.0, %v476
    %v478 = vpop.f32.mrf.mxu0
    %479 = vdwg.mxu0
    %v480 = vadd.f32 %v335, %v406
    %v481 = vxor.u32 %v480, 2147483648
    %v482 = vmul.f32 %v481, 1.442695
    %v483 = vpow.pop %v482
    %v484 = vadd.f32 %v483, 1.0
    %v485 = vrcp.pop %v484
    %v486 = vmul.f32 1.0, %v485
    %v488 = vrot.slane %v335, 2
    %v490 = vadd.f32 %v488, %v408
    %v491 = vxor.u32 %v490, 2147483648
    %v492 = vmul.f32 %v491, 1.442695
    %v493 = vpow.pop %v492
    %v494 = vadd.f32 %v493, 1.0
    %v495 = vrcp.pop %v494
    %v496 = vmul.f32 1.0, %v495
    %v497 = vadd.f32 %v477, %v57
    %v498 = vmul.f32 %v486, %v497
    %v499 = vrot.slane %v335, 4
    %v501 = vadd.f32 %v499, %v498
    %v502 = vtanh.pop %v501
    %v503 = vsub.f32 1.0, %v496
    %v504 = vmul.f32 %v503, %v502
    %v505 = vmul.f32 %v496, %v334
    %v506 = vadd.f32 %v504, %v505
    %v507 = vld [vmem:[%s94] sm:$0x3f]
    %v509 = vsel %vm163, %v506, 0
    %511 = vmatprep.subr.mxu0 0.0
    %512 = vmatpush1.msra.mxu0 0.0
    %513 = vmatprep.subr.mxu0 0.0
    %514 = vmatpush1.msra.mxu0 0.0
    %515 = vmatprep.subr.mxu0 0.0
    %516 = vmatpush1.msra.mxu0 0.0
    %517 = vmatprep.subr.mxu0 0.0
    %518 = vmatpush1.msra.mxu0 0.0
    %519 = vmatprep.subr.mxu0 0.0
    %520 = vmatpush1.msra.mxu0 0.0
    %521 = vmatprep.subr.mxu0 0.0
    %522 = vmatpush1.msra.mxu0 0.0
    %523 = vmatprep.subr.mxu0 0.0
    %524 = vmatpush1.msra.mxu0 0.0
    %525 = vmatprep.subr.mxu0 0.0
    %526 = vmatpush1.msra.mxu0 0.0
    %527 = vmatprep.subr.mxu0 0.0
    %528 = vmatpush1.msra.mxu0 0.0
    %529 = vmatprep.subr.mxu0 0.0
    %530 = vmatpush1.msra.mxu0 0.0
    %531 = vmatprep.subr.mxu0 0.0
    %532 = vmatpush1.msra.mxu0 0.0
    %533 = vmatprep.subr.mxu0 0.0
    %534 = vmatpush1.msra.mxu0 0.0
    %535 = vmatprep.subr.mxu0 %v55
    %536 = vmatpush1.msra.mxu0 %v54
    %537 = vmatprep.subr.mxu0 %v52
    %538 = vmatpush1.msra.mxu0 %v51
    %539 = vmatprep.subr.mxu0 %v49
    %540 = vmatpush1.msra.mxu0 %v48
    %541 = vmatprep.subr.mxu0 %v46
    %542 = vmatpush1.msra.mxu0 %v45
    %543 = vmatprep.subr.mxu0 0.0
    %544 = vmatpush2.msra.mxu0 0.0
    %545 = vmatprep.subr.mxu0 0.0
    %546 = vmatpush2.msra.mxu0 0.0
    %547 = vmatprep.subr.mxu0 0.0
    %548 = vmatpush2.msra.mxu0 0.0
    %549 = vmatprep.subr.mxu0 0.0
    %550 = vmatpush2.msra.mxu0 0.0
    %551 = vmatprep.subr.mxu0 0.0
    %552 = vmatpush2.msra.mxu0 0.0
    %553 = vmatprep.subr.mxu0 0.0
    %554 = vmatpush2.msra.mxu0 0.0
    %555 = vmatprep.subr.mxu0 0.0
    %556 = vmatpush2.msra.mxu0 0.0
    %557 = vmatprep.subr.mxu0 0.0
    %558 = vmatpush2.msra.mxu0 0.0
    %559 = vmatprep.subr.mxu0 0.0
    %560 = vmatpush2.msra.mxu0 0.0
    %561 = vmatprep.subr.mxu0 0.0
    %562 = vmatpush2.msra.mxu0 0.0
    %563 = vmatprep.subr.mxu0 0.0
    %564 = vmatpush2.msra.mxu0 0.0
    %565 = vmatprep.subr.mxu0 0.0
    %566 = vmatpush2.msra.mxu0 0.0
    %567 = vmatprep.subr.mxu0 0.0
    %568 = vmatpush2.msra.mxu0 0.0
    %569 = vmatprep.subr.mxu0 0.0
    %570 = vmatpush2.msra.mxu0 0.0
    %571 = vmatprep.subr.mxu0 0.0
    %572 = vmatpush2.msra.mxu0 0.0
    %573 = vmatprep.subr.mxu0 0.0
    %574 = vmatpush2.msra.mxu0 0.0
    %575 = vmatprep.mubr.f32.mxu0 0.0
    %576 = vmatmul.mubr.f32.gmra.mxu0 %v509
    %v577 = vpop.f32.mrf.mxu0
    %v578 = vadd.f32 0.0, %v577
    %v579 = vpop.f32.mrf.mxu0
    %v580 = vadd.f32 0.0, %v579
    %581 = vdwg.mxu0
    %582 = vmatprep.subr.mxu0 0.0
    %583 = vmatpush1.msra.mxu0 0.0
    %584 = vmatprep.subr.mxu0 0.0
    %585 = vmatpush1.msra.mxu0 0.0
    %586 = vmatprep.subr.mxu0 0.0
    %587 = vmatpush1.msra.mxu0 0.0
    %588 = vmatprep.subr.mxu0 0.0
    %589 = vmatpush1.msra.mxu0 0.0
    %590 = vmatprep.subr.mxu0 0.0
    %591 = vmatpush1.msra.mxu0 0.0
    %592 = vmatprep.subr.mxu0 0.0
    %593 = vmatpush1.msra.mxu0 0.0
    %594 = vmatprep.subr.mxu0 0.0
    %595 = vmatpush1.msra.mxu0 0.0
    %596 = vmatprep.subr.mxu0 0.0
    %597 = vmatpush1.msra.mxu0 0.0
    %598 = vmatprep.subr.mxu0 0.0
    %599 = vmatpush1.msra.mxu0 0.0
    %600 = vmatprep.subr.mxu0 0.0
    %601 = vmatpush1.msra.mxu0 0.0
    %602 = vmatprep.subr.mxu0 0.0
    %603 = vmatpush1.msra.mxu0 0.0
    %604 = vmatprep.subr.mxu0 0.0
    %605 = vmatpush1.msra.mxu0 0.0
    %606 = vmatprep.subr.mxu0 0.0
    %607 = vmatpush1.msra.mxu0 %v56
    %608 = vmatprep.subr.mxu0 0.0
    %609 = vmatpush1.msra.mxu0 %v53
    %610 = vmatprep.subr.mxu0 0.0
    %611 = vmatpush1.msra.mxu0 %v50
    %612 = vmatprep.subr.mxu0 0.0
    %613 = vmatpush1.msra.mxu0 %v47
    %614 = vmatprep.subr.mxu0 0.0
    %615 = vmatpush2.msra.mxu0 0.0
    %616 = vmatprep.subr.mxu0 0.0
    %617 = vmatpush2.msra.mxu0 0.0
    %618 = vmatprep.subr.mxu0 0.0
    %619 = vmatpush2.msra.mxu0 0.0
    %620 = vmatprep.subr.mxu0 0.0
    %621 = vmatpush2.msra.mxu0 0.0
    %622 = vmatprep.subr.mxu0 0.0
    %623 = vmatpush2.msra.mxu0 0.0
    %624 = vmatprep.subr.mxu0 0.0
    %625 = vmatpush2.msra.mxu0 0.0
    %626 = vmatprep.subr.mxu0 0.0
    %627 = vmatpush2.msra.mxu0 0.0
    %628 = vmatprep.subr.mxu0 0.0
    %629 = vmatpush2.msra.mxu0 0.0
    %630 = vmatprep.subr.mxu0 0.0
    %631 = vmatpush2.msra.mxu0 0.0
    %632 = vmatprep.subr.mxu0 0.0
    %633 = vmatpush2.msra.mxu0 0.0
    %634 = vmatprep.subr.mxu0 0.0
    %635 = vmatpush2.msra.mxu0 0.0
    %636 = vmatprep.subr.mxu0 0.0
    %637 = vmatpush2.msra.mxu0 0.0
    %638 = vmatprep.subr.mxu0 0.0
    %639 = vmatpush2.msra.mxu0 0.0
    %640 = vmatprep.subr.mxu0 0.0
    %641 = vmatpush2.msra.mxu0 0.0
    %642 = vmatprep.subr.mxu0 0.0
    %643 = vmatpush2.msra.mxu0 0.0
    %644 = vmatprep.subr.mxu0 0.0
    %645 = vmatpush2.msra.mxu0 0.0
    %646 = vmatprep.mubr.f32.mxu0 0.0
    %647 = vmatmul.mubr.f32.gmra.mxu0 %v509
    %v648 = vpop.f32.mrf.mxu0
    %v649 = vadd.f32 0.0, %v648
    %v650 = vpop.f32.mrf.mxu0
    %651 = vdwg.mxu0
    %v652 = vadd.f32 %v507, %v578
    %v653 = vxor.u32 %v652, 2147483648
    %v654 = vmul.f32 %v653, 1.442695
    %v655 = vpow.pop %v654
    %v656 = vadd.f32 %v655, 1.0
    %v657 = vrcp.pop %v656
    %v658 = vmul.f32 1.0, %v657
    %v660 = vrot.slane %v507, 2
    %v662 = vadd.f32 %v660, %v580
    %v663 = vxor.u32 %v662, 2147483648
    %v664 = vmul.f32 %v663, 1.442695
    %v665 = vpow.pop %v664
    %v666 = vadd.f32 %v665, 1.0
    %v667 = vrcp.pop %v666
    %v668 = vmul.f32 1.0, %v667
    %v669 = vadd.f32 %v649, %v57
    %v670 = vmul.f32 %v658, %v669
    %v671 = vrot.slane %v507, 4
    %v673 = vadd.f32 %v671, %v670
    %v674 = vtanh.pop %v673
    %v675 = vsub.f32 1.0, %v668
    %v676 = vmul.f32 %v675, %v674
    %v677 = vmul.f32 %v668, %v506
    %v678 = vadd.f32 %v676, %v677
    %v679 = vld [vmem:[%s106] sm:$0x3f]
    %v681 = vsel %vm163, %v678, 0
    %683 = vmatprep.subr.mxu0 0.0
    %684 = vmatpush1.msra.mxu0 0.0
    %685 = vmatprep.subr.mxu0 0.0
    %686 = vmatpush1.msra.mxu0 0.0
    %687 = vmatprep.subr.mxu0 0.0
    %688 = vmatpush1.msra.mxu0 0.0
    %689 = vmatprep.subr.mxu0 0.0
    %690 = vmatpush1.msra.mxu0 0.0
    %691 = vmatprep.subr.mxu0 0.0
    %692 = vmatpush1.msra.mxu0 0.0
    %693 = vmatprep.subr.mxu0 0.0
    %694 = vmatpush1.msra.mxu0 0.0
    %695 = vmatprep.subr.mxu0 0.0
    %696 = vmatpush1.msra.mxu0 0.0
    %697 = vmatprep.subr.mxu0 0.0
    %698 = vmatpush1.msra.mxu0 0.0
    %699 = vmatprep.subr.mxu0 0.0
    %700 = vmatpush1.msra.mxu0 0.0
    %701 = vmatprep.subr.mxu0 0.0
    %702 = vmatpush1.msra.mxu0 0.0
    %703 = vmatprep.subr.mxu0 0.0
    %704 = vmatpush1.msra.mxu0 0.0
    %705 = vmatprep.subr.mxu0 0.0
    %706 = vmatpush1.msra.mxu0 0.0
    %707 = vmatprep.subr.mxu0 %v55
    %708 = vmatpush1.msra.mxu0 %v54
    %709 = vmatprep.subr.mxu0 %v52
    %710 = vmatpush1.msra.mxu0 %v51
    %711 = vmatprep.subr.mxu0 %v49
    %712 = vmatpush1.msra.mxu0 %v48
    %713 = vmatprep.subr.mxu0 %v46
    %714 = vmatpush1.msra.mxu0 %v45
    %715 = vmatprep.subr.mxu0 0.0
    %716 = vmatpush2.msra.mxu0 0.0
    %717 = vmatprep.subr.mxu0 0.0
    %718 = vmatpush2.msra.mxu0 0.0
    %719 = vmatprep.subr.mxu0 0.0
    %720 = vmatpush2.msra.mxu0 0.0
    %721 = vmatprep.subr.mxu0 0.0
    %722 = vmatpush2.msra.mxu0 0.0
    %723 = vmatprep.subr.mxu0 0.0
    %724 = vmatpush2.msra.mxu0 0.0
    %725 = vmatprep.subr.mxu0 0.0
    %726 = vmatpush2.msra.mxu0 0.0
    %727 = vmatprep.subr.mxu0 0.0
    %728 = vmatpush2.msra.mxu0 0.0
    %729 = vmatprep.subr.mxu0 0.0
    %730 = vmatpush2.msra.mxu0 0.0
    %731 = vmatprep.subr.mxu0 0.0
    %732 = vmatpush2.msra.mxu0 0.0
    %733 = vmatprep.subr.mxu0 0.0
    %734 = vmatpush2.msra.mxu0 0.0
    %735 = vmatprep.subr.mxu0 0.0
    %736 = vmatpush2.msra.mxu0 0.0
    %737 = vmatprep.subr.mxu0 0.0
    %738 = vmatpush2.msra.mxu0 0.0
    %739 = vmatprep.subr.mxu0 0.0
    %740 = vmatpush2.msra.mxu0 0.0
    %741 = vmatprep.subr.mxu0 0.0
    %742 = vmatpush2.msra.mxu0 0.0
    %743 = vmatprep.subr.mxu0 0.0
    %744 = vmatpush2.msra.mxu0 0.0
    %745 = vmatprep.subr.mxu0 0.0
    %746 = vmatpush2.msra.mxu0 0.0
    %747 = vmatprep.mubr.f32.mxu0 0.0
    %748 = vmatmul.mubr.f32.gmra.mxu0 %v681
    %v749 = vpop.f32.mrf.mxu0
    %v750 = vadd.f32 0.0, %v749
    %v751 = vpop.f32.mrf.mxu0
    %v752 = vadd.f32 0.0, %v751
    %753 = vdwg.mxu0
    %754 = vmatprep.subr.mxu0 0.0
    %755 = vmatpush1.msra.mxu0 0.0
    %756 = vmatprep.subr.mxu0 0.0
    %757 = vmatpush1.msra.mxu0 0.0
    %758 = vmatprep.subr.mxu0 0.0
    %759 = vmatpush1.msra.mxu0 0.0
    %760 = vmatprep.subr.mxu0 0.0
    %761 = vmatpush1.msra.mxu0 0.0
    %762 = vmatprep.subr.mxu0 0.0
    %763 = vmatpush1.msra.mxu0 0.0
    %764 = vmatprep.subr.mxu0 0.0
    %765 = vmatpush1.msra.mxu0 0.0
    %766 = vmatprep.subr.mxu0 0.0
    %767 = vmatpush1.msra.mxu0 0.0
    %768 = vmatprep.subr.mxu0 0.0
    %769 = vmatpush1.msra.mxu0 0.0
    %770 = vmatprep.subr.mxu0 0.0
    %771 = vmatpush1.msra.mxu0 0.0
    %772 = vmatprep.subr.mxu0 0.0
    %773 = vmatpush1.msra.mxu0 0.0
    %774 = vmatprep.subr.mxu0 0.0
    %775 = vmatpush1.msra.mxu0 0.0
    %776 = vmatprep.subr.mxu0 0.0
    %777 = vmatpush1.msra.mxu0 0.0
    %778 = vmatprep.subr.mxu0 0.0
    %779 = vmatpush1.msra.mxu0 %v56
    %780 = vmatprep.subr.mxu0 0.0
    %781 = vmatpush1.msra.mxu0 %v53
    %782 = vmatprep.subr.mxu0 0.0
    %783 = vmatpush1.msra.mxu0 %v50
    %784 = vmatprep.subr.mxu0 0.0
    %785 = vmatpush1.msra.mxu0 %v47
    %786 = vmatprep.subr.mxu0 0.0
    %787 = vmatpush2.msra.mxu0 0.0
    %788 = vmatprep.subr.mxu0 0.0
    %789 = vmatpush2.msra.mxu0 0.0
    %790 = vmatprep.subr.mxu0 0.0
    %791 = vmatpush2.msra.mxu0 0.0
    %792 = vmatprep.subr.mxu0 0.0
    %793 = vmatpush2.msra.mxu0 0.0
    %794 = vmatprep.subr.mxu0 0.0
    %795 = vmatpush2.msra.mxu0 0.0
    %796 = vmatprep.subr.mxu0 0.0
    %797 = vmatpush2.msra.mxu0 0.0
    %798 = vmatprep.subr.mxu0 0.0
    %799 = vmatpush2.msra.mxu0 0.0
    %800 = vmatprep.subr.mxu0 0.0
    %801 = vmatpush2.msra.mxu0 0.0
    %802 = vmatprep.subr.mxu0 0.0
    %803 = vmatpush2.msra.mxu0 0.0
    %804 = vmatprep.subr.mxu0 0.0
    %805 = vmatpush2.msra.mxu0 0.0
    %806 = vmatprep.subr.mxu0 0.0
    %807 = vmatpush2.msra.mxu0 0.0
    %808 = vmatprep.subr.mxu0 0.0
    %809 = vmatpush2.msra.mxu0 0.0
    %810 = vmatprep.subr.mxu0 0.0
    %811 = vmatpush2.msra.mxu0 0.0
    %812 = vmatprep.subr.mxu0 0.0
    %813 = vmatpush2.msra.mxu0 0.0
    %814 = vmatprep.subr.mxu0 0.0
    %815 = vmatpush2.msra.mxu0 0.0
    %816 = vmatprep.subr.mxu0 0.0
    %817 = vmatpush2.msra.mxu0 0.0
    %818 = vmatprep.mubr.f32.mxu0 0.0
    %819 = vmatmul.mubr.f32.gmra.mxu0 %v681
    %v820 = vpop.f32.mrf.mxu0
    %v821 = vadd.f32 0.0, %v820
    %v822 = vpop.f32.mrf.mxu0
    %823 = vdwg.mxu0
    %v824 = vadd.f32 %v679, %v750
    %v825 = vxor.u32 %v824, 2147483648
    %v826 = vmul.f32 %v825, 1.442695
    %v827 = vpow.pop %v826
    %v828 = vadd.f32 %v827, 1.0
    %v829 = vrcp.pop %v828
    %v830 = vmul.f32 1.0, %v829
    %v832 = vrot.slane %v679, 2
    %v834 = vadd.f32 %v832, %v752
    %v835 = vxor.u32 %v834, 2147483648
    %v836 = vmul.f32 %v835, 1.442695
    %v837 = vpow.pop %v836
    %v838 = vadd.f32 %v837, 1.0
    %v839 = vrcp.pop %v838
    %v840 = vmul.f32 1.0, %v839
    %v841 = vadd.f32 %v821, %v57
    %v842 = vmul.f32 %v830, %v841
    %v843 = vrot.slane %v679, 4
    %v845 = vadd.f32 %v843, %v842
    %v846 = vtanh.pop %v845
    %v847 = vsub.f32 1.0, %v840
    %v848 = vmul.f32 %v847, %v846
    %v849 = vmul.f32 %v840, %v678
    %v850 = vadd.f32 %v848, %v849
    %v851 = vld [vmem:[%s118] sm:$0x3f]
    %v853 = vsel %vm163, %v850, 0
    %855 = vmatprep.subr.mxu0 0.0
    %856 = vmatpush1.msra.mxu0 0.0
    %857 = vmatprep.subr.mxu0 0.0
    %858 = vmatpush1.msra.mxu0 0.0
    %859 = vmatprep.subr.mxu0 0.0
    %860 = vmatpush1.msra.mxu0 0.0
    %861 = vmatprep.subr.mxu0 0.0
    %862 = vmatpush1.msra.mxu0 0.0
    %863 = vmatprep.subr.mxu0 0.0
    %864 = vmatpush1.msra.mxu0 0.0
    %865 = vmatprep.subr.mxu0 0.0
    %866 = vmatpush1.msra.mxu0 0.0
    %867 = vmatprep.subr.mxu0 0.0
    %868 = vmatpush1.msra.mxu0 0.0
    %869 = vmatprep.subr.mxu0 0.0
    %870 = vmatpush1.msra.mxu0 0.0
    %871 = vmatprep.subr.mxu0 0.0
    %872 = vmatpush1.msra.mxu0 0.0
    %873 = vmatprep.subr.mxu0 0.0
    %874 = vmatpush1.msra.mxu0 0.0
    %875 = vmatprep.subr.mxu0 0.0
    %876 = vmatpush1.msra.mxu0 0.0
    %877 = vmatprep.subr.mxu0 0.0
    %878 = vmatpush1.msra.mxu0 0.0
    %879 = vmatprep.subr.mxu0 %v55
    %880 = vmatpush1.msra.mxu0 %v54
    %881 = vmatprep.subr.mxu0 %v52
    %882 = vmatpush1.msra.mxu0 %v51
    %883 = vmatprep.subr.mxu0 %v49
    %884 = vmatpush1.msra.mxu0 %v48
    %885 = vmatprep.subr.mxu0 %v46
    %886 = vmatpush1.msra.mxu0 %v45
    %887 = vmatprep.subr.mxu0 0.0
    %888 = vmatpush2.msra.mxu0 0.0
    %889 = vmatprep.subr.mxu0 0.0
    %890 = vmatpush2.msra.mxu0 0.0
    %891 = vmatprep.subr.mxu0 0.0
    %892 = vmatpush2.msra.mxu0 0.0
    %893 = vmatprep.subr.mxu0 0.0
    %894 = vmatpush2.msra.mxu0 0.0
    %895 = vmatprep.subr.mxu0 0.0
    %896 = vmatpush2.msra.mxu0 0.0
    %897 = vmatprep.subr.mxu0 0.0
    %898 = vmatpush2.msra.mxu0 0.0
    %899 = vmatprep.subr.mxu0 0.0
    %900 = vmatpush2.msra.mxu0 0.0
    %901 = vmatprep.subr.mxu0 0.0
    %902 = vmatpush2.msra.mxu0 0.0
    %903 = vmatprep.subr.mxu0 0.0
    %904 = vmatpush2.msra.mxu0 0.0
    %905 = vmatprep.subr.mxu0 0.0
    %906 = vmatpush2.msra.mxu0 0.0
    %907 = vmatprep.subr.mxu0 0.0
    %908 = vmatpush2.msra.mxu0 0.0
    %909 = vmatprep.subr.mxu0 0.0
    %910 = vmatpush2.msra.mxu0 0.0
    %911 = vmatprep.subr.mxu0 0.0
    %912 = vmatpush2.msra.mxu0 0.0
    %913 = vmatprep.subr.mxu0 0.0
    %914 = vmatpush2.msra.mxu0 0.0
    %915 = vmatprep.subr.mxu0 0.0
    %916 = vmatpush2.msra.mxu0 0.0
    %917 = vmatprep.subr.mxu0 0.0
    %918 = vmatpush2.msra.mxu0 0.0
    %919 = vmatprep.mubr.f32.mxu0 0.0
    %920 = vmatmul.mubr.f32.gmra.mxu0 %v853
    %v921 = vpop.f32.mrf.mxu0
    %v922 = vadd.f32 0.0, %v921
    %v923 = vpop.f32.mrf.mxu0
    %v924 = vadd.f32 0.0, %v923
    %925 = vdwg.mxu0
    %926 = vmatprep.subr.mxu0 0.0
    %927 = vmatpush1.msra.mxu0 0.0
    %928 = vmatprep.subr.mxu0 0.0
    %929 = vmatpush1.msra.mxu0 0.0
    %930 = vmatprep.subr.mxu0 0.0
    %931 = vmatpush1.msra.mxu0 0.0
    %932 = vmatprep.subr.mxu0 0.0
    %933 = vmatpush1.msra.mxu0 0.0
    %934 = vmatprep.subr.mxu0 0.0
    %935 = vmatpush1.msra.mxu0 0.0
    %936 = vmatprep.subr.mxu0 0.0
    %937 = vmatpush1.msra.mxu0 0.0
    %938 = vmatprep.subr.mxu0 0.0
    %939 = vmatpush1.msra.mxu0 0.0
    %940 = vmatprep.subr.mxu0 0.0
    %941 = vmatpush1.msra.mxu0 0.0
    %942 = vmatprep.subr.mxu0 0.0
    %943 = vmatpush1.msra.mxu0 0.0
    %944 = vmatprep.subr.mxu0 0.0
    %945 = vmatpush1.msra.mxu0 0.0
    %946 = vmatprep.subr.mxu0 0.0
    %947 = vmatpush1.msra.mxu0 0.0
    %948 = vmatprep.subr.mxu0 0.0
    %949 = vmatpush1.msra.mxu0 0.0
    %950 = vmatprep.subr.mxu0 0.0
    %951 = vmatpush1.msra.mxu0 %v56
    %952 = vmatprep.subr.mxu0 0.0
    %953 = vmatpush1.msra.mxu0 %v53
    %954 = vmatprep.subr.mxu0 0.0
    %955 = vmatpush1.msra.mxu0 %v50
    %956 = vmatprep.subr.mxu0 0.0
    %957 = vmatpush1.msra.mxu0 %v47
    %958 = vmatprep.subr.mxu0 0.0
    %959 = vmatpush2.msra.mxu0 0.0
    %960 = vmatprep.subr.mxu0 0.0
    %961 = vmatpush2.msra.mxu0 0.0
    %962 = vmatprep.subr.mxu0 0.0
    %963 = vmatpush2.msra.mxu0 0.0
    %964 = vmatprep.subr.mxu0 0.0
    %965 = vmatpush2.msra.mxu0 0.0
    %966 = vmatprep.subr.mxu0 0.0
    %967 = vmatpush2.msra.mxu0 0.0
    %968 = vmatprep.subr.mxu0 0.0
    %969 = vmatpush2.msra.mxu0 0.0
    %970 = vmatprep.subr.mxu0 0.0
    %971 = vmatpush2.msra.mxu0 0.0
    %972 = vmatprep.subr.mxu0 0.0
    %973 = vmatpush2.msra.mxu0 0.0
    %974 = vmatprep.subr.mxu0 0.0
    %975 = vmatpush2.msra.mxu0 0.0
    %976 = vmatprep.subr.mxu0 0.0
    %977 = vmatpush2.msra.mxu0 0.0
    %978 = vmatprep.subr.mxu0 0.0
    %979 = vmatpush2.msra.mxu0 0.0
    %980 = vmatprep.subr.mxu0 0.0
    %981 = vmatpush2.msra.mxu0 0.0
    %982 = vmatprep.subr.mxu0 0.0
    %983 = vmatpush2.msra.mxu0 0.0
    %984 = vmatprep.subr.mxu0 0.0
    %985 = vmatpush2.msra.mxu0 0.0
    %986 = vmatprep.subr.mxu0 0.0
    %987 = vmatpush2.msra.mxu0 0.0
    %988 = vmatprep.subr.mxu0 0.0
    %989 = vmatpush2.msra.mxu0 0.0
    %990 = vmatprep.mubr.f32.mxu0 0.0
    %991 = vmatmul.mubr.f32.gmra.mxu0 %v853
    %v992 = vpop.f32.mrf.mxu0
    %v993 = vadd.f32 0.0, %v992
    %v994 = vpop.f32.mrf.mxu0
    %995 = vdwg.mxu0
    %v996 = vadd.f32 %v851, %v922
    %v997 = vxor.u32 %v996, 2147483648
    %v998 = vmul.f32 %v997, 1.442695
    %v999 = vpow.pop %v998
    %v1000 = vadd.f32 %v999, 1.0
    %v1001 = vrcp.pop %v1000
    %v1002 = vmul.f32 1.0, %v1001
    %v1004 = vrot.slane %v851, 2
    %v1006 = vadd.f32 %v1004, %v924
    %v1007 = vxor.u32 %v1006, 2147483648
    %v1008 = vmul.f32 %v1007, 1.442695
    %v1009 = vpow.pop %v1008
    %v1010 = vadd.f32 %v1009, 1.0
    %v1011 = vrcp.pop %v1010
    %v1012 = vmul.f32 1.0, %v1011
    %v1013 = vadd.f32 %v993, %v57
    %v1014 = vmul.f32 %v1002, %v1013
    %v1015 = vrot.slane %v851, 4
    %v1017 = vadd.f32 %v1015, %v1014
    %v1018 = vtanh.pop %v1017
    %v1019 = vsub.f32 1.0, %v1012
    %v1020 = vmul.f32 %v1019, %v1018
    %v1021 = vmul.f32 %v1012, %v850
    %v1022 = vadd.f32 %v1020, %v1021
    %v1023 = vld [vmem:[%s130] sm:$0x3f]
    %v1025 = vsel %vm163, %v1022, 0
    %1027 = vmatprep.subr.mxu0 0.0
    %1028 = vmatpush1.msra.mxu0 0.0
    %1029 = vmatprep.subr.mxu0 0.0
    %1030 = vmatpush1.msra.mxu0 0.0
    %1031 = vmatprep.subr.mxu0 0.0
    %1032 = vmatpush1.msra.mxu0 0.0
    %1033 = vmatprep.subr.mxu0 0.0
    %1034 = vmatpush1.msra.mxu0 0.0
    %1035 = vmatprep.subr.mxu0 0.0
    %1036 = vmatpush1.msra.mxu0 0.0
    %1037 = vmatprep.subr.mxu0 0.0
    %1038 = vmatpush1.msra.mxu0 0.0
    %1039 = vmatprep.subr.mxu0 0.0
    %1040 = vmatpush1.msra.mxu0 0.0
    %1041 = vmatprep.subr.mxu0 0.0
    %1042 = vmatpush1.msra.mxu0 0.0
    %1043 = vmatprep.subr.mxu0 0.0
    %1044 = vmatpush1.msra.mxu0 0.0
    %1045 = vmatprep.subr.mxu0 0.0
    %1046 = vmatpush1.msra.mxu0 0.0
    %1047 = vmatprep.subr.mxu0 0.0
    %1048 = vmatpush1.msra.mxu0 0.0
    %1049 = vmatprep.subr.mxu0 0.0
    %1050 = vmatpush1.msra.mxu0 0.0
    %1051 = vmatprep.subr.mxu0 %v55
    %1052 = vmatpush1.msra.mxu0 %v54
    %1053 = vmatprep.subr.mxu0 %v52
    %1054 = vmatpush1.msra.mxu0 %v51
    %1055 = vmatprep.subr.mxu0 %v49
    %1056 = vmatpush1.msra.mxu0 %v48
    %1057 = vmatprep.subr.mxu0 %v46
    %1058 = vmatpush1.msra.mxu0 %v45
    %1059 = vmatprep.subr.mxu0 0.0
    %1060 = vmatpush2.msra.mxu0 0.0
    %1061 = vmatprep.subr.mxu0 0.0
    %1062 = vmatpush2.msra.mxu0 0.0
    %1063 = vmatprep.subr.mxu0 0.0
    %1064 = vmatpush2.msra.mxu0 0.0
    %1065 = vmatprep.subr.mxu0 0.0
    %1066 = vmatpush2.msra.mxu0 0.0
    %1067 = vmatprep.subr.mxu0 0.0
    %1068 = vmatpush2.msra.mxu0 0.0
    %1069 = vmatprep.subr.mxu0 0.0
    %1070 = vmatpush2.msra.mxu0 0.0
    %1071 = vmatprep.subr.mxu0 0.0
    %1072 = vmatpush2.msra.mxu0 0.0
    %1073 = vmatprep.subr.mxu0 0.0
    %1074 = vmatpush2.msra.mxu0 0.0
    %1075 = vmatprep.subr.mxu0 0.0
    %1076 = vmatpush2.msra.mxu0 0.0
    %1077 = vmatprep.subr.mxu0 0.0
    %1078 = vmatpush2.msra.mxu0 0.0
    %1079 = vmatprep.subr.mxu0 0.0
    %1080 = vmatpush2.msra.mxu0 0.0
    %1081 = vmatprep.subr.mxu0 0.0
    %1082 = vmatpush2.msra.mxu0 0.0
    %1083 = vmatprep.subr.mxu0 0.0
    %1084 = vmatpush2.msra.mxu0 0.0
    %1085 = vmatprep.subr.mxu0 0.0
    %1086 = vmatpush2.msra.mxu0 0.0
    %1087 = vmatprep.subr.mxu0 0.0
    %1088 = vmatpush2.msra.mxu0 0.0
    %1089 = vmatprep.subr.mxu0 0.0
    %1090 = vmatpush2.msra.mxu0 0.0
    %1091 = vmatprep.mubr.f32.mxu0 0.0
    %1092 = vmatmul.mubr.f32.gmra.mxu0 %v1025
    %v1093 = vpop.f32.mrf.mxu0
    %v1094 = vadd.f32 0.0, %v1093
    %v1095 = vpop.f32.mrf.mxu0
    %v1096 = vadd.f32 0.0, %v1095
    %1097 = vdwg.mxu0
    %1098 = vmatprep.subr.mxu0 0.0
    %1099 = vmatpush1.msra.mxu0 0.0
    %1100 = vmatprep.subr.mxu0 0.0
    %1101 = vmatpush1.msra.mxu0 0.0
    %1102 = vmatprep.subr.mxu0 0.0
    %1103 = vmatpush1.msra.mxu0 0.0
    %1104 = vmatprep.subr.mxu0 0.0
    %1105 = vmatpush1.msra.mxu0 0.0
    %1106 = vmatprep.subr.mxu0 0.0
    %1107 = vmatpush1.msra.mxu0 0.0
    %1108 = vmatprep.subr.mxu0 0.0
    %1109 = vmatpush1.msra.mxu0 0.0
    %1110 = vmatprep.subr.mxu0 0.0
    %1111 = vmatpush1.msra.mxu0 0.0
    %1112 = vmatprep.subr.mxu0 0.0
    %1113 = vmatpush1.msra.mxu0 0.0
    %1114 = vmatprep.subr.mxu0 0.0
    %1115 = vmatpush1.msra.mxu0 0.0
    %1116 = vmatprep.subr.mxu0 0.0
    %1117 = vmatpush1.msra.mxu0 0.0
    %1118 = vmatprep.subr.mxu0 0.0
    %1119 = vmatpush1.msra.mxu0 0.0
    %1120 = vmatprep.subr.mxu0 0.0
    %1121 = vmatpush1.msra.mxu0 0.0
    %1122 = vmatprep.subr.mxu0 0.0
    %1123 = vmatpush1.msra.mxu0 %v56
    %1124 = vmatprep.subr.mxu0 0.0
    %1125 = vmatpush1.msra.mxu0 %v53
    %1126 = vmatprep.subr.mxu0 0.0
    %1127 = vmatpush1.msra.mxu0 %v50
    %1128 = vmatprep.subr.mxu0 0.0
    %1129 = vmatpush1.msra.mxu0 %v47
    %1130 = vmatprep.subr.mxu0 0.0
    %1131 = vmatpush2.msra.mxu0 0.0
    %1132 = vmatprep.subr.mxu0 0.0
    %1133 = vmatpush2.msra.mxu0 0.0
    %1134 = vmatprep.subr.mxu0 0.0
    %1135 = vmatpush2.msra.mxu0 0.0
    %1136 = vmatprep.subr.mxu0 0.0
    %1137 = vmatpush2.msra.mxu0 0.0
    %1138 = vmatprep.subr.mxu0 0.0
    %1139 = vmatpush2.msra.mxu0 0.0
    %1140 = vmatprep.subr.mxu0 0.0
    %1141 = vmatpush2.msra.mxu0 0.0
    %1142 = vmatprep.subr.mxu0 0.0
    %1143 = vmatpush2.msra.mxu0 0.0
    %1144 = vmatprep.subr.mxu0 0.0
    %1145 = vmatpush2.msra.mxu0 0.0
    %1146 = vmatprep.subr.mxu0 0.0
    %1147 = vmatpush2.msra.mxu0 0.0
    %1148 = vmatprep.subr.mxu0 0.0
    %1149 = vmatpush2.msra.mxu0 0.0
    %1150 = vmatprep.subr.mxu0 0.0
    %1151 = vmatpush2.msra.mxu0 0.0
    %1152 = vmatprep.subr.mxu0 0.0
    %1153 = vmatpush2.msra.mxu0 0.0
    %1154 = vmatprep.subr.mxu0 0.0
    %1155 = vmatpush2.msra.mxu0 0.0
    %1156 = vmatprep.subr.mxu0 0.0
    %1157 = vmatpush2.msra.mxu0 0.0
    %1158 = vmatprep.subr.mxu0 0.0
    %1159 = vmatpush2.msra.mxu0 0.0
    %1160 = vmatprep.subr.mxu0 0.0
    %1161 = vmatpush2.msra.mxu0 0.0
    %1162 = vmatprep.mubr.f32.mxu0 0.0
    %1163 = vmatmul.mubr.f32.gmra.mxu0 %v1025
    %v1164 = vpop.f32.mrf.mxu0
    %v1165 = vadd.f32 0.0, %v1164
    %v1166 = vpop.f32.mrf.mxu0
    %1167 = vdwg.mxu0
    %v1168 = vadd.f32 %v1023, %v1094
    %v1169 = vxor.u32 %v1168, 2147483648
    %v1170 = vmul.f32 %v1169, 1.442695
    %v1171 = vpow.pop %v1170
    %v1172 = vadd.f32 %v1171, 1.0
    %v1173 = vrcp.pop %v1172
    %v1174 = vmul.f32 1.0, %v1173
    %v1176 = vrot.slane %v1023, 2
    %v1178 = vadd.f32 %v1176, %v1096
    %v1179 = vxor.u32 %v1178, 2147483648
    %v1180 = vmul.f32 %v1179, 1.442695
    %v1181 = vpow.pop %v1180
    %v1182 = vadd.f32 %v1181, 1.0
    %v1183 = vrcp.pop %v1182
    %v1184 = vmul.f32 1.0, %v1183
    %v1185 = vadd.f32 %v1165, %v57
    %v1186 = vmul.f32 %v1174, %v1185
    %v1187 = vrot.slane %v1023, 4
    %v1189 = vadd.f32 %v1187, %v1186
    %v1190 = vtanh.pop %v1189
    %v1191 = vsub.f32 1.0, %v1184
    %v1192 = vmul.f32 %v1191, %v1190
    %v1193 = vmul.f32 %v1184, %v1022
    %v1194 = vadd.f32 %v1192, %v1193
    %v1195 = vld [vmem:[%s142] sm:$0x3f]
    %v1197 = vsel %vm163, %v1194, 0
    %1199 = vmatprep.subr.mxu0 0.0
    %1200 = vmatpush1.msra.mxu0 0.0
    %1201 = vmatprep.subr.mxu0 0.0
    %1202 = vmatpush1.msra.mxu0 0.0
    %1203 = vmatprep.subr.mxu0 0.0
    %1204 = vmatpush1.msra.mxu0 0.0
    %1205 = vmatprep.subr.mxu0 0.0
    %1206 = vmatpush1.msra.mxu0 0.0
    %1207 = vmatprep.subr.mxu0 0.0
    %1208 = vmatpush1.msra.mxu0 0.0
    %1209 = vmatprep.subr.mxu0 0.0
    %1210 = vmatpush1.msra.mxu0 0.0
    %1211 = vmatprep.subr.mxu0 0.0
    %1212 = vmatpush1.msra.mxu0 0.0
    %1213 = vmatprep.subr.mxu0 0.0
    %1214 = vmatpush1.msra.mxu0 0.0
    %1215 = vmatprep.subr.mxu0 0.0
    %1216 = vmatpush1.msra.mxu0 0.0
    %1217 = vmatprep.subr.mxu0 0.0
    %1218 = vmatpush1.msra.mxu0 0.0
    %1219 = vmatprep.subr.mxu0 0.0
    %1220 = vmatpush1.msra.mxu0 0.0
    %1221 = vmatprep.subr.mxu0 0.0
    %1222 = vmatpush1.msra.mxu0 0.0
    %1223 = vmatprep.subr.mxu0 %v55
    %1224 = vmatpush1.msra.mxu0 %v54
    %1225 = vmatprep.subr.mxu0 %v52
    %1226 = vmatpush1.msra.mxu0 %v51
    %1227 = vmatprep.subr.mxu0 %v49
    %1228 = vmatpush1.msra.mxu0 %v48
    %1229 = vmatprep.subr.mxu0 %v46
    %1230 = vmatpush1.msra.mxu0 %v45
    %1231 = vmatprep.subr.mxu0 0.0
    %1232 = vmatpush2.msra.mxu0 0.0
    %1233 = vmatprep.subr.mxu0 0.0
    %1234 = vmatpush2.msra.mxu0 0.0
    %1235 = vmatprep.subr.mxu0 0.0
    %1236 = vmatpush2.msra.mxu0 0.0
    %1237 = vmatprep.subr.mxu0 0.0
    %1238 = vmatpush2.msra.mxu0 0.0
    %1239 = vmatprep.subr.mxu0 0.0
    %1240 = vmatpush2.msra.mxu0 0.0
    %1241 = vmatprep.subr.mxu0 0.0
    %1242 = vmatpush2.msra.mxu0 0.0
    %1243 = vmatprep.subr.mxu0 0.0
    %1244 = vmatpush2.msra.mxu0 0.0
    %1245 = vmatprep.subr.mxu0 0.0
    %1246 = vmatpush2.msra.mxu0 0.0
    %1247 = vmatprep.subr.mxu0 0.0
    %1248 = vmatpush2.msra.mxu0 0.0
    %1249 = vmatprep.subr.mxu0 0.0
    %1250 = vmatpush2.msra.mxu0 0.0
    %1251 = vmatprep.subr.mxu0 0.0
    %1252 = vmatpush2.msra.mxu0 0.0
    %1253 = vmatprep.subr.mxu0 0.0
    %1254 = vmatpush2.msra.mxu0 0.0
    %1255 = vmatprep.subr.mxu0 0.0
    %1256 = vmatpush2.msra.mxu0 0.0
    %1257 = vmatprep.subr.mxu0 0.0
    %1258 = vmatpush2.msra.mxu0 0.0
    %1259 = vmatprep.subr.mxu0 0.0
    %1260 = vmatpush2.msra.mxu0 0.0
    %1261 = vmatprep.subr.mxu0 0.0
    %1262 = vmatpush2.msra.mxu0 0.0
    %1263 = vmatprep.mubr.f32.mxu0 0.0
    %1264 = vmatmul.mubr.f32.gmra.mxu0 %v1197
    %v1265 = vpop.f32.mrf.mxu0
    %v1266 = vadd.f32 0.0, %v1265
    %v1267 = vpop.f32.mrf.mxu0
    %v1268 = vadd.f32 0.0, %v1267
    %1269 = vdwg.mxu0
    %1270 = vmatprep.subr.mxu0 0.0
    %1271 = vmatpush1.msra.mxu0 0.0
    %1272 = vmatprep.subr.mxu0 0.0
    %1273 = vmatpush1.msra.mxu0 0.0
    %1274 = vmatprep.subr.mxu0 0.0
    %1275 = vmatpush1.msra.mxu0 0.0
    %1276 = vmatprep.subr.mxu0 0.0
    %1277 = vmatpush1.msra.mxu0 0.0
    %1278 = vmatprep.subr.mxu0 0.0
    %1279 = vmatpush1.msra.mxu0 0.0
    %1280 = vmatprep.subr.mxu0 0.0
    %1281 = vmatpush1.msra.mxu0 0.0
    %1282 = vmatprep.subr.mxu0 0.0
    %1283 = vmatpush1.msra.mxu0 0.0
    %1284 = vmatprep.subr.mxu0 0.0
    %1285 = vmatpush1.msra.mxu0 0.0
    %1286 = vmatprep.subr.mxu0 0.0
    %1287 = vmatpush1.msra.mxu0 0.0
    %1288 = vmatprep.subr.mxu0 0.0
    %1289 = vmatpush1.msra.mxu0 0.0
    %1290 = vmatprep.subr.mxu0 0.0
    %1291 = vmatpush1.msra.mxu0 0.0
    %1292 = vmatprep.subr.mxu0 0.0
    %1293 = vmatpush1.msra.mxu0 0.0
    %1294 = vmatprep.subr.mxu0 0.0
    %1295 = vmatpush1.msra.mxu0 %v56
    %1296 = vmatprep.subr.mxu0 0.0
    %1297 = vmatpush1.msra.mxu0 %v53
    %1298 = vmatprep.subr.mxu0 0.0
    %1299 = vmatpush1.msra.mxu0 %v50
    %1300 = vmatprep.subr.mxu0 0.0
    %1301 = vmatpush1.msra.mxu0 %v47
    %1302 = vmatprep.subr.mxu0 0.0
    %1303 = vmatpush2.msra.mxu0 0.0
    %1304 = vmatprep.subr.mxu0 0.0
    %1305 = vmatpush2.msra.mxu0 0.0
    %1306 = vmatprep.subr.mxu0 0.0
    %1307 = vmatpush2.msra.mxu0 0.0
    %1308 = vmatprep.subr.mxu0 0.0
    %1309 = vmatpush2.msra.mxu0 0.0
    %1310 = vmatprep.subr.mxu0 0.0
    %1311 = vmatpush2.msra.mxu0 0.0
    %1312 = vmatprep.subr.mxu0 0.0
    %1313 = vmatpush2.msra.mxu0 0.0
    %1314 = vmatprep.subr.mxu0 0.0
    %1315 = vmatpush2.msra.mxu0 0.0
    %1316 = vmatprep.subr.mxu0 0.0
    %1317 = vmatpush2.msra.mxu0 0.0
    %1318 = vmatprep.subr.mxu0 0.0
    %1319 = vmatpush2.msra.mxu0 0.0
    %1320 = vmatprep.subr.mxu0 0.0
    %1321 = vmatpush2.msra.mxu0 0.0
    %1322 = vmatprep.subr.mxu0 0.0
    %1323 = vmatpush2.msra.mxu0 0.0
    %1324 = vmatprep.subr.mxu0 0.0
    %1325 = vmatpush2.msra.mxu0 0.0
    %1326 = vmatprep.subr.mxu0 0.0
    %1327 = vmatpush2.msra.mxu0 0.0
    %1328 = vmatprep.subr.mxu0 0.0
    %1329 = vmatpush2.msra.mxu0 0.0
    %1330 = vmatprep.subr.mxu0 0.0
    %1331 = vmatpush2.msra.mxu0 0.0
    %1332 = vmatprep.subr.mxu0 0.0
    %1333 = vmatpush2.msra.mxu0 0.0
    %1334 = vmatprep.mubr.f32.mxu0 0.0
    %1335 = vmatmul.mubr.f32.gmra.mxu0 %v1197
    %v1336 = vpop.f32.mrf.mxu0
    %v1337 = vadd.f32 0.0, %v1336
    %v1338 = vpop.f32.mrf.mxu0
    %1339 = vdwg.mxu0
    %v1340 = vadd.f32 %v1195, %v1266
    %v1341 = vxor.u32 %v1340, 2147483648
    %v1342 = vmul.f32 %v1341, 1.442695
    %v1343 = vpow.pop %v1342
    %v1344 = vadd.f32 %v1343, 1.0
    %v1345 = vrcp.pop %v1344
    %v1346 = vmul.f32 1.0, %v1345
    %v1348 = vrot.slane %v1195, 2
    %v1350 = vadd.f32 %v1348, %v1268
    %v1351 = vxor.u32 %v1350, 2147483648
    %v1352 = vmul.f32 %v1351, 1.442695
    %v1353 = vpow.pop %v1352
    %v1354 = vadd.f32 %v1353, 1.0
    %v1355 = vrcp.pop %v1354
    %v1356 = vmul.f32 1.0, %v1355
    %v1357 = vadd.f32 %v1337, %v57
    %v1358 = vmul.f32 %v1346, %v1357
    %v1359 = vrot.slane %v1195, 4
    %v1361 = vadd.f32 %v1359, %v1358
    %v1362 = vtanh.pop %v1361
    %v1363 = vsub.f32 1.0, %v1356
    %v1364 = vmul.f32 %v1363, %v1362
    %v1365 = vmul.f32 %v1356, %v1194
    %v1366 = vadd.f32 %v1364, %v1365
    %v1367 = vld [vmem:[%s154] sm:$0x3f]
    %v1369 = vsel %vm163, %v1366, 0
    %1371 = vmatprep.subr.mxu0 0.0
    %1372 = vmatpush1.msra.mxu0 0.0
    %1373 = vmatprep.subr.mxu0 0.0
    %1374 = vmatpush1.msra.mxu0 0.0
    %1375 = vmatprep.subr.mxu0 0.0
    %1376 = vmatpush1.msra.mxu0 0.0
    %1377 = vmatprep.subr.mxu0 0.0
    %1378 = vmatpush1.msra.mxu0 0.0
    %1379 = vmatprep.subr.mxu0 0.0
    %1380 = vmatpush1.msra.mxu0 0.0
    %1381 = vmatprep.subr.mxu0 0.0
    %1382 = vmatpush1.msra.mxu0 0.0
    %1383 = vmatprep.subr.mxu0 0.0
    %1384 = vmatpush1.msra.mxu0 0.0
    %1385 = vmatprep.subr.mxu0 0.0
    %1386 = vmatpush1.msra.mxu0 0.0
    %1387 = vmatprep.subr.mxu0 0.0
    %1388 = vmatpush1.msra.mxu0 0.0
    %1389 = vmatprep.subr.mxu0 0.0
    %1390 = vmatpush1.msra.mxu0 0.0
    %1391 = vmatprep.subr.mxu0 0.0
    %1392 = vmatpush1.msra.mxu0 0.0
    %1393 = vmatprep.subr.mxu0 0.0
    %1394 = vmatpush1.msra.mxu0 0.0
    %1395 = vmatprep.subr.mxu0 %v55
    %1396 = vmatpush1.msra.mxu0 %v54
    %1397 = vmatprep.subr.mxu0 %v52
    %1398 = vmatpush1.msra.mxu0 %v51
    %1399 = vmatprep.subr.mxu0 %v49
    %1400 = vmatpush1.msra.mxu0 %v48
    %1401 = vmatprep.subr.mxu0 %v46
    %1402 = vmatpush1.msra.mxu0 %v45
    %1403 = vmatprep.subr.mxu0 0.0
    %1404 = vmatpush2.msra.mxu0 0.0
    %1405 = vmatprep.subr.mxu0 0.0
    %1406 = vmatpush2.msra.mxu0 0.0
    %1407 = vmatprep.subr.mxu0 0.0
    %1408 = vmatpush2.msra.mxu0 0.0
    %1409 = vmatprep.subr.mxu0 0.0
    %1410 = vmatpush2.msra.mxu0 0.0
    %1411 = vmatprep.subr.mxu0 0.0
    %1412 = vmatpush2.msra.mxu0 0.0
    %1413 = vmatprep.subr.mxu0 0.0
    %1414 = vmatpush2.msra.mxu0 0.0
    %1415 = vmatprep.subr.mxu0 0.0
    %1416 = vmatpush2.msra.mxu0 0.0
    %1417 = vmatprep.subr.mxu0 0.0
    %1418 = vmatpush2.msra.mxu0 0.0
    %1419 = vmatprep.subr.mxu0 0.0
    %1420 = vmatpush2.msra.mxu0 0.0
    %1421 = vmatprep.subr.mxu0 0.0
    %1422 = vmatpush2.msra.mxu0 0.0
    %1423 = vmatprep.subr.mxu0 0.0
    %1424 = vmatpush2.msra.mxu0 0.0
    %1425 = vmatprep.subr.mxu0 0.0
    %1426 = vmatpush2.msra.mxu0 0.0
    %1427 = vmatprep.subr.mxu0 0.0
    %1428 = vmatpush2.msra.mxu0 0.0
    %1429 = vmatprep.subr.mxu0 0.0
    %1430 = vmatpush2.msra.mxu0 0.0
    %1431 = vmatprep.subr.mxu0 0.0
    %1432 = vmatpush2.msra.mxu0 0.0
    %1433 = vmatprep.subr.mxu0 0.0
    %1434 = vmatpush2.msra.mxu0 0.0
    %1435 = vmatprep.mubr.f32.mxu0 0.0
    %1436 = vmatmul.mubr.f32.gmra.mxu0 %v1369
    %v1437 = vpop.f32.mrf.mxu0
    %v1438 = vadd.f32 0.0, %v1437
    %v1439 = vpop.f32.mrf.mxu0
    %v1440 = vadd.f32 0.0, %v1439
    %1441 = vdwg.mxu0
    %1442 = vmatprep.subr.mxu0 0.0
    %1443 = vmatpush1.msra.mxu0 0.0
    %1444 = vmatprep.subr.mxu0 0.0
    %1445 = vmatpush1.msra.mxu0 0.0
    %1446 = vmatprep.subr.mxu0 0.0
    %1447 = vmatpush1.msra.mxu0 0.0
    %1448 = vmatprep.subr.mxu0 0.0
    %1449 = vmatpush1.msra.mxu0 0.0
    %1450 = vmatprep.subr.mxu0 0.0
    %1451 = vmatpush1.msra.mxu0 0.0
    %1452 = vmatprep.subr.mxu0 0.0
    %1453 = vmatpush1.msra.mxu0 0.0
    %1454 = vmatprep.subr.mxu0 0.0
    %1455 = vmatpush1.msra.mxu0 0.0
    %1456 = vmatprep.subr.mxu0 0.0
    %1457 = vmatpush1.msra.mxu0 0.0
    %1458 = vmatprep.subr.mxu0 0.0
    %1459 = vmatpush1.msra.mxu0 0.0
    %1460 = vmatprep.subr.mxu0 0.0
    %1461 = vmatpush1.msra.mxu0 0.0
    %1462 = vmatprep.subr.mxu0 0.0
    %1463 = vmatpush1.msra.mxu0 0.0
    %1464 = vmatprep.subr.mxu0 0.0
    %1465 = vmatpush1.msra.mxu0 0.0
    %1466 = vmatprep.subr.mxu0 0.0
    %1467 = vmatpush1.msra.mxu0 %v56
    %1468 = vmatprep.subr.mxu0 0.0
    %1469 = vmatpush1.msra.mxu0 %v53
    %1470 = vmatprep.subr.mxu0 0.0
    %1471 = vmatpush1.msra.mxu0 %v50
    %1472 = vmatprep.subr.mxu0 0.0
    %1473 = vmatpush1.msra.mxu0 %v47
    %1474 = vmatprep.subr.mxu0 0.0
    %1475 = vmatpush2.msra.mxu0 0.0
    %1476 = vmatprep.subr.mxu0 0.0
    %1477 = vmatpush2.msra.mxu0 0.0
    %1478 = vmatprep.subr.mxu0 0.0
    %1479 = vmatpush2.msra.mxu0 0.0
    %1480 = vmatprep.subr.mxu0 0.0
    %1481 = vmatpush2.msra.mxu0 0.0
    %1482 = vmatprep.subr.mxu0 0.0
    %1483 = vmatpush2.msra.mxu0 0.0
    %1484 = vmatprep.subr.mxu0 0.0
    %1485 = vmatpush2.msra.mxu0 0.0
    %1486 = vmatprep.subr.mxu0 0.0
    %1487 = vmatpush2.msra.mxu0 0.0
    %1488 = vmatprep.subr.mxu0 0.0
    %1489 = vmatpush2.msra.mxu0 0.0
    %1490 = vmatprep.subr.mxu0 0.0
    %1491 = vmatpush2.msra.mxu0 0.0
    %1492 = vmatprep.subr.mxu0 0.0
    %1493 = vmatpush2.msra.mxu0 0.0
    %1494 = vmatprep.subr.mxu0 0.0
    %1495 = vmatpush2.msra.mxu0 0.0
    %1496 = vmatprep.subr.mxu0 0.0
    %1497 = vmatpush2.msra.mxu0 0.0
    %1498 = vmatprep.subr.mxu0 0.0
    %1499 = vmatpush2.msra.mxu0 0.0
    %1500 = vmatprep.subr.mxu0 0.0
    %1501 = vmatpush2.msra.mxu0 0.0
    %1502 = vmatprep.subr.mxu0 0.0
    %1503 = vmatpush2.msra.mxu0 0.0
    %1504 = vmatprep.subr.mxu0 0.0
    %1505 = vmatpush2.msra.mxu0 0.0
    %1506 = vmatprep.mubr.f32.mxu0 0.0
    %1507 = vmatmul.mubr.f32.gmra.mxu0 %v1369
    %v1508 = vpop.f32.mrf.mxu0
    %v1509 = vadd.f32 0.0, %v1508
    %v1510 = vpop.f32.mrf.mxu0
    %1511 = vdwg.mxu0
    %v1512 = vadd.f32 %v1367, %v1438
    %v1513 = vxor.u32 %v1512, 2147483648
    %v1514 = vmul.f32 %v1513, 1.442695
    %v1515 = vpow.pop %v1514
    %v1516 = vadd.f32 %v1515, 1.0
    %v1517 = vrcp.pop %v1516
    %v1518 = vmul.f32 1.0, %v1517
    %v1520 = vrot.slane %v1367, 2
    %v1522 = vadd.f32 %v1520, %v1440
    %v1523 = vxor.u32 %v1522, 2147483648
    %v1524 = vmul.f32 %v1523, 1.442695
    %v1525 = vpow.pop %v1524
    %v1526 = vadd.f32 %v1525, 1.0
    %v1527 = vrcp.pop %v1526
    %v1528 = vmul.f32 1.0, %v1527
    %v1529 = vadd.f32 %v1509, %v57
    %v1530 = vmul.f32 %v1518, %v1529
    %v1531 = vrot.slane %v1367, 4
    %v1533 = vadd.f32 %v1531, %v1530
    %v1534 = vtanh.pop %v1533
    %v1535 = vsub.f32 1.0, %v1528
    %v1536 = vmul.f32 %v1535, %v1534
    %v1537 = vmul.f32 %v1528, %v1366
    %v1538 = vadd.f32 %v1536, %v1537
    %v1539 = vlaneseq
    %v1540 = vshrl.u32 %v1539, 7
    %v1541 = vsub.s32 0, %v1540
    %v1542 = vrot.slane %v62, %v1541
    %v1544 = vsel %vm163, %v1538, 0
    %1546 = vmatprep.subr.mxu0 0.0
    %1547 = vmatpush1.msra.mxu0 0.0
    %1548 = vmatprep.subr.mxu0 0.0
    %1549 = vmatpush1.msra.mxu0 0.0
    %1550 = vmatprep.subr.mxu0 0.0
    %1551 = vmatpush1.msra.mxu0 0.0
    %1552 = vmatprep.subr.mxu0 0.0
    %1553 = vmatpush1.msra.mxu0 0.0
    %1554 = vmatprep.subr.mxu0 0.0
    %1555 = vmatpush1.msra.mxu0 0.0
    %1556 = vmatprep.subr.mxu0 0.0
    %1557 = vmatpush1.msra.mxu0 0.0
    %1558 = vmatprep.subr.mxu0 0.0
    %1559 = vmatpush1.msra.mxu0 0.0
    %1560 = vmatprep.subr.mxu0 0.0
    %1561 = vmatpush1.msra.mxu0 0.0
    %1562 = vmatprep.subr.mxu0 0.0
    %1563 = vmatpush1.msra.mxu0 0.0
    %1564 = vmatprep.subr.mxu0 0.0
    %1565 = vmatpush1.msra.mxu0 0.0
    %1566 = vmatprep.subr.mxu0 0.0
    %1567 = vmatpush1.msra.mxu0 0.0
    %1568 = vmatprep.subr.mxu0 0.0
    %1569 = vmatpush1.msra.mxu0 0.0
    %1570 = vmatprep.subr.mxu0 0.0
    %1571 = vmatpush1.msra.mxu0 %v61
    %1572 = vmatprep.subr.mxu0 0.0
    %1573 = vmatpush1.msra.mxu0 %v60
    %1574 = vmatprep.subr.mxu0 0.0
    %1575 = vmatpush1.msra.mxu0 %v59
    %1576 = vmatprep.subr.mxu0 0.0
    %1577 = vmatpush1.msra.mxu0 %v58
    %1578 = vmatprep.subr.mxu0 0.0
    %1579 = vmatpush2.msra.mxu0 0.0
    %1580 = vmatprep.subr.mxu0 0.0
    %1581 = vmatpush2.msra.mxu0 0.0
    %1582 = vmatprep.subr.mxu0 0.0
    %1583 = vmatpush2.msra.mxu0 0.0
    %1584 = vmatprep.subr.mxu0 0.0
    %1585 = vmatpush2.msra.mxu0 0.0
    %1586 = vmatprep.subr.mxu0 0.0
    %1587 = vmatpush2.msra.mxu0 0.0
    %1588 = vmatprep.subr.mxu0 0.0
    %1589 = vmatpush2.msra.mxu0 0.0
    %1590 = vmatprep.subr.mxu0 0.0
    %1591 = vmatpush2.msra.mxu0 0.0
    %1592 = vmatprep.subr.mxu0 0.0
    %1593 = vmatpush2.msra.mxu0 0.0
    %1594 = vmatprep.subr.mxu0 0.0
    %1595 = vmatpush2.msra.mxu0 0.0
    %1596 = vmatprep.subr.mxu0 0.0
    %1597 = vmatpush2.msra.mxu0 0.0
    %1598 = vmatprep.subr.mxu0 0.0
    %1599 = vmatpush2.msra.mxu0 0.0
    %1600 = vmatprep.subr.mxu0 0.0
    %1601 = vmatpush2.msra.mxu0 0.0
    %1602 = vmatprep.subr.mxu0 0.0
    %1603 = vmatpush2.msra.mxu0 0.0
    %1604 = vmatprep.subr.mxu0 0.0
    %1605 = vmatpush2.msra.mxu0 0.0
    %1606 = vmatprep.subr.mxu0 0.0
    %1607 = vmatpush2.msra.mxu0 0.0
    %1608 = vmatprep.subr.mxu0 0.0
    %1609 = vmatpush2.msra.mxu0 0.0
    %1610 = vmatprep.mubr.f32.mxu0 0.0
    %1611 = vmatmul.mubr.f32.gmra.mxu0 %v1544
    %v1612 = vpop.f32.mrf.mxu0
    %v1613 = vadd.f32 %v1542, %v1612
    %v1614 = vpop.f32.mrf.mxu0
    %1615 = vdwg.mxu0
    %vm1616 = vcmask 156672
    %v1617 = vsel %vm1616, %v1613, -inf
    %1618 = vmax.xlane.f32.xlu0 %v1617
    %v1619 = vpop.xlane.xlu0 %1618
    %v1620 = vsub.f32 %v1613, %v1619
    %v1621 = vmul.f32 %v1620, 1.442695
    %v1622 = vpow.pop %v1621
    %v1623 = vsel %vm1616, %v1622, 0.0
    %1624 = vadd.xlane.f32.xlu0 %v1623
    %v1625 = vpop.xlane.xlu0 %1624
    %v1626 = vlog2.pop %v1625
    %v1627 = vmul.f32 %v1626, 0.6931472
    %v1628 = vsub.f32 %v1620, %v1627
    %1629 = vst.msk [vmem:[#allocation8] sm:$0x3] %vm1616, %v1628
    // Predicated region
    $region26: #{tpu_custom_call.1} parent=1 // pred_check
      _
    $region27: #{tpu_custom_call.1} parent=1 // pred_check_branch
      %1631 = sbr.rel (0) target = $region29
    $region28: #{tpu_custom_call.1} parent=1 // pred_region
      %s1633 = ssub.s32 32, 32
      %1634 = vsyncadd [#allocation5], %s1633
      %s1636 = sshll.u32 [#allocation8], 4
      %s1637 = int_to_ptr.vmem [resolvable:$true] %s1636
      %1639 = dma.vmem_to_hbm [thread:$0]  %s1637, 32, %s4, [#allocation5]
    $region29: #{tpu_custom_call.1} parent=1 // pred_fallthru
      _
    // Predicated region
    $region30: #{tpu_custom_call.1} parent=1 // pred_check
      _
    $region31: #{tpu_custom_call.1} parent=1 // pred_check_branch
      %1641 = sbr.rel (0) target = $region33
    $region32: #{tpu_custom_call.1} parent=1 // pred_region
      %1642 = dma.done [#allocation5], 32
    $region33: #{tpu_custom_call.1} parent=1 // pred_fallthru
      _
    %1643 = vsyncpa [#allocation4], 1
    %1644 = vsyncpa [#allocation5], 1
    %1645 = vsyncpa [#allocation6], 1

</llo_original>
